<compile_context>
chip_gen: v5e
topology: v5e:2x2
jax: 0.10.0
libtpu: 0.0.40
codegen_flags: <defaults>
</compile_context>

<pallas_src>
import functools

import jax
import jax.numpy as jnp
from jax.experimental import pallas as pl
from jax.experimental.pallas import tpu as pltpu


def _seq2mat_kernel(x_ref, y_ref, vflat_ref, wx_ref, wy_ref, wc_ref, wv_ref,
                    b_ref, o_ref, ctx_ref, *, L, H, D, TM):
    """One (batch, m-tile) per grid step.

    x_ref, y_ref : (1, L, H)      VMEM (full sequence; context spans need all of x)
    vflat_ref    : (H, D*H)       VMEM  V transposed/flattened: V_flat[p, k*H+d] = V[k,p,d]
    wx/wy/wc_ref : (H, H)         VMEM  W^T blocks for the x / y / context features
    wv_ref       : (D, H)         VMEM  W^T block for the bilinear features
    b_ref        : (1, H)         VMEM  bias of W
    o_ref        : (1, TM, L, H)  VMEM  output tile (m in [m0, m0+TM), all n)
    ctx_ref      : (TM, L, H)     VMEM scratch for the span-max context of this tile
    """
    m0 = pl.multiple_of(pl.program_id(1) * TM, TM)

    y_full = y_ref[0]                                   # [L, H]
    x_tile = x_ref[0, pl.ds(m0, TM), :]                 # [TM, H]
    m_ids = m0 + jax.lax.broadcasted_iota(jnp.int32, (TM, 1), 0)   # [TM, 1]

    # ---- context[m, n, :] = max over k in [min(m,n), max(m,n)] of x[k, :] ----
    # Forward pass over n: for n >= m this is the running max of x[m..n];
    # for n <= m it holds the filler x[m] (still inside the span).
    def fwd_body(n, cur):
        xn = x_ref[0, pl.ds(n, 1), :]                   # [1, H]
        new = jnp.where(n <= m_ids, x_tile, jnp.maximum(cur, xn))
        ctx_ref[:, pl.ds(n, 1), :] = new[:, None, :]
        return new

    jax.lax.fori_loop(0, L, fwd_body, x_tile)

    # Backward pass over n (descending): for n <= m this is the running max of
    # x[n..m]; for n >= m it is the filler x[m].  The true context is the
    # elementwise max of the forward and backward passes (filler is always a
    # member of the span, so the max is exact).
    def bwd_body(t, cur):
        n = L - 1 - t
        xn = x_ref[0, pl.ds(n, 1), :]                   # [1, H]
        new = jnp.where(n >= m_ids, x_tile, jnp.maximum(cur, xn))
        ctx_ref[:, pl.ds(n, 1), :] = jnp.maximum(ctx_ref[:, pl.ds(n, 1), :],
                                                 new[:, None, :])
        return new

    jax.lax.fori_loop(0, L, bwd_body, x_tile)

    # ---- Linear W over concat([x, y, context, xvy]) as split matmuls + adds ----
    xw = jnp.dot(x_tile, wx_ref[...], preferred_element_type=jnp.float32)   # [TM, H]
    yw = jnp.dot(y_full, wy_ref[...], preferred_element_type=jnp.float32)   # [L, H]
    ctxw = jnp.dot(ctx_ref[...].reshape(TM * L, H), wc_ref[...],
                   preferred_element_type=jnp.float32).reshape(TM, L, H)

    acc = (xw[:, None, :] + yw[None, :, :] + ctxw
           + b_ref[...].astype(jnp.float32)[None, :, :])                    # [TM, L, H]

    # ---- bilinear term: one fused [TM,H]@[H,D*H] matmul, then per-k FMA ----
    xv = jnp.dot(x_tile, vflat_ref[...], preferred_element_type=jnp.float32)  # [TM, D*H]
    for k in range(D):                                   # D is small & static
        xvk = xv[:, k * H:(k + 1) * H].astype(x_tile.dtype)
        sk = jax.lax.dot_general(                        # [TM, L] : x[m] V[k] y[n]
            xvk, y_full,
            dimension_numbers=(((1,), (1,)), ((), ())),
            preferred_element_type=jnp.float32)
        wvk = wv_ref[pl.ds(k, 1), :].astype(jnp.float32)  # [1, H]
        acc = acc + sk[:, :, None] * wvk[None, :, :]

    # activation: config.hidden_act == "gelu_new" (tanh-approximated GELU)
    o_ref[0] = jax.nn.gelu(acc, approximate=True).astype(o_ref.dtype)


def _pick_tm(L, target_pair_rows):
    tm = max(1, min(L, max(1, target_pair_rows // max(L, 1))))
    while L % tm:
        tm -= 1
    return tm


def tensorcontext_seq2mat(x, y, V, W_weight, W_bias, *, tile_m=None,
                          target_pair_rows=1024):
    """x, y: [B, L, H]; V: [D, H, H]; W_weight: [H, 3H+D]; W_bias: [H]."""
    B, L, H = x.shape
    D = V.shape[0]

    TM = tile_m if tile_m is not None else _pick_tm(L, target_pair_rows)
    while L % TM:
        TM -= 1
    num_m_tiles = L // TM
    grid = (B, num_m_tiles)

    # Glue: split W^T into blocks matching concat([x, y, context, xvy]); flatten V
    # so the first bilinear stage is one [TM,H]@[H,D*H] matmul.
    WT = W_weight.T                                    # [3H+D, H]
    wx, wy, wc, wv = WT[:H], WT[H:2 * H], WT[2 * H:3 * H], WT[3 * H:]
    bias = W_bias.reshape(1, H)
    v_flat = jnp.transpose(V, (1, 0, 2)).reshape(H, D * H)

    # VMEM budget estimate for the chosen tile (double-buffered I/O + scratch + temps).
    itemsize = x.dtype.itemsize
    tile_rows = TM * L
    est = (2 * tile_rows * H * itemsize          # output tile, double-buffered
           + tile_rows * H * itemsize            # ctx scratch
           + 4 * L * H * itemsize                # x, y double-buffered
           + 2 * H * D * H * itemsize            # V_flat double-buffered
           + 2 * (3 * H * H + D * H + H) * itemsize
           + 4 * tile_rows * H * 4)              # f32 temps (acc, ctxw, ...)
    vmem_limit = int(min(64 * 1024 * 1024, max(32 * 1024 * 1024, 2 * est)))

    flops = int(
        2 * B * L * H * H                        # xw
        + 2 * B * num_m_tiles * L * H * H        # yw (recomputed per m-tile)
        + 2 * B * L * L * H * H                  # context @ Wc
        + 2 * B * L * H * D * H                  # x @ V_flat
        + 2 * B * D * L * L * H                  # (xV_k) . y
        + B * L * L * H * (2 * D + 6))           # broadcast adds / FMAs / gelu poly
    cost = pl.CostEstimate(
        flops=flops,
        transcendentals=int(B * L * L * H),
        bytes_accessed=int((2 * B * L * H + B * L * L * H) * itemsize
                           + (H * D * H + 3 * H * H + D * H + H)
                           * W_weight.dtype.itemsize))

    kernel = functools.partial(_seq2mat_kernel, L=L, H=H, D=D, TM=TM)
    out = pl.pallas_call(
        kernel,
        out_shape=jax.ShapeDtypeStruct((B, L, L, H), x.dtype),
        grid_spec=pltpu.PrefetchScalarGridSpec(
            num_scalar_prefetch=0,
            grid=grid,
            in_specs=[
                pl.BlockSpec((1, L, H), lambda b, i: (b, 0, 0)),     # x (full seq)
                pl.BlockSpec((1, L, H), lambda b, i: (b, 0, 0)),     # y (full seq)
                pl.BlockSpec((H, D * H), lambda b, i: (0, 0)),       # V flattened
                pl.BlockSpec((H, H), lambda b, i: (0, 0)),           # W^T block (x)
                pl.BlockSpec((H, H), lambda b, i: (0, 0)),           # W^T block (y)
                pl.BlockSpec((H, H), lambda b, i: (0, 0)),           # W^T block (context)
                pl.BlockSpec((D, H), lambda b, i: (0, 0)),           # W^T block (xvy)
                pl.BlockSpec((1, H), lambda b, i: (0, 0)),           # bias
            ],
            out_specs=pl.BlockSpec((1, TM, L, H), lambda b, i: (b, i, 0, 0)),
            scratch_shapes=[pltpu.VMEM((TM, L, H), x.dtype)],
        ),
        compiler_params=pltpu.CompilerParams(
            dimension_semantics=("parallel", "parallel"),
            vmem_limit_bytes=vmem_limit),
        cost_estimate=cost,
    )(x, y, v_flat, wx, wy, wc, wv, bias)
    return out


def reference(x, y, V, W_weight, W_bias):
    """Plain-JAX replica of the PyTorch forward, for correctness checking."""
    B, L, H = x.shape
    idx = jnp.arange(L)
    m, n, k = idx[:, None, None], idx[None, :, None], idx[None, None, :]
    mask = (k >= jnp.minimum(m, n)) & (k <= jnp.maximum(m, n))        # [L, L, L]
    masked = jnp.where(mask[None, :, :, :, None], x[:, None, None, :, :],
                       jnp.finfo(x.dtype).min)
    context = jnp.max(masked, axis=3)                                 # [B, L, L, H]
    xb = jnp.broadcast_to(x[:, :, None, :], (B, L, L, H))
    yb = jnp.broadcast_to(y[:, None, :, :], (B, L, L, H))
    xvy = jnp.einsum('bmp,kpd,bnd->bmnk', x, V, y)
    t = jnp.concatenate([xb, yb, context, xvy], axis=-1)              # [B,L,L,3H+D]
    tw = t @ W_weight.T + W_bias
    return jax.nn.gelu(tw, approximate=True)


if __name__ == "__main__":
    # Small config: hidden_size=32, num_d=4, seq_len=8, batch=2,
    # hidden_act="gelu_new", initializer_range=0.02.
    B, L, H, D = 2, 8, 32, 4

    key = jax.random.PRNGKey(0)
    kx, ky, kv, kw, kb = jax.random.split(key, 5)
    x = jax.random.normal(kx, (B, L, H), dtype=jnp.float32)
    y = jax.random.normal(ky, (B, L, H), dtype=jnp.float32)
    V = 0.02 * jax.random.normal(kv, (D, H, H), dtype=jnp.float32)
    W_weight = 0.05 * jax.random.normal(kw, (H, 3 * H + D), dtype=jnp.float32)
    W_bias = 0.05 * jax.random.normal(kb, (H,), dtype=jnp.float32)

    out = tensorcontext_seq2mat(x, y, V, W_weight, W_bias)
    out = jax.block_until_ready(out)

    ref = jax.block_until_ready(reference(x, y, V, W_weight, W_bias))
    assert out.shape == (B, L, L, H), out.shape
    assert jnp.allclose(out, ref, rtol=1e-5, atol=1e-5), float(
        jnp.max(jnp.abs(out - ref)))

    print("KERNEL_OK")
</pallas_src>

<mosaic_0001>
module attributes {stable_mosaic.version = 11 : i64} {
  func.func @_seq2mat_kernel(%arg0: i32, %arg1: i32, %arg2: memref<1x8x32xf32, #tpu.memory_space<vmem>>, %arg3: memref<1x8x32xf32, #tpu.memory_space<vmem>>, %arg4: memref<32x128xf32, #tpu.memory_space<vmem>>, %arg5: memref<32x32xf32, #tpu.memory_space<vmem>>, %arg6: memref<32x32xf32, #tpu.memory_space<vmem>>, %arg7: memref<32x32xf32, #tpu.memory_space<vmem>>, %arg8: memref<4x32xf32, #tpu.memory_space<vmem>>, %arg9: memref<1x32xf32, #tpu.memory_space<vmem>>, %arg10: memref<1x8x8x32xf32, #tpu.memory_space<vmem>>, %arg11: memref<8x8x32xf32, #tpu.memory_space<vmem>>) attributes {dimension_semantics = [#tpu.dimension_semantics<parallel>, #tpu.dimension_semantics<parallel>], iteration_bounds = array<i64: 2, 1>, scalar_prefetch = 0 : i64, scratch_operands = 1 : i64, tpu.core_type = #tpu.core_type<tc>, window_params = [{transform_indices = @transform_0, window_bounds = array<i64: 1, 8, 32>}, {transform_indices = @transform_1, window_bounds = array<i64: 1, 8, 32>}, {pipeline_mode = #tpu.pipeline_mode<synchronous>, transform_indices = @transform_2, window_bounds = array<i64: 32, 128>}, {pipeline_mode = #tpu.pipeline_mode<synchronous>, transform_indices = @transform_3, window_bounds = array<i64: 32, 32>}, {pipeline_mode = #tpu.pipeline_mode<synchronous>, transform_indices = @transform_4, window_bounds = array<i64: 32, 32>}, {pipeline_mode = #tpu.pipeline_mode<synchronous>, transform_indices = @transform_5, window_bounds = array<i64: 32, 32>}, {pipeline_mode = #tpu.pipeline_mode<synchronous>, transform_indices = @transform_6, window_bounds = array<i64: 4, 32>}, {pipeline_mode = #tpu.pipeline_mode<synchronous>, transform_indices = @transform_7, window_bounds = array<i64: 1, 32>}, {transform_indices = @transform_8, window_bounds = array<i64: 1, 8, 8, 32>}]} {
    %c8_i32 = arith.constant 8 : i32
    %0 = arith.muli %arg1, %c8_i32 : i32
    %1 = tpu.assume_multiple %0, 8 : i32
    %c0 = arith.constant 0 : index
    %c0_0 = arith.constant 0 : index
    %c0_1 = arith.constant 0 : index
    %2 = vector.load %arg3[%c0, %c0_0, %c0_1] : memref<1x8x32xf32, #tpu.memory_space<vmem>>, vector<1x8x32xf32>
    %3 = vector.shape_cast %2 : vector<1x8x32xf32> to vector<8x32xf32>
    %c0_2 = arith.constant 0 : index
    %4 = arith.index_cast %1 : i32 to index
    %c0_3 = arith.constant 0 : index
    %5 = vector.load %arg2[%c0_2, %4, %c0_3] : memref<1x8x32xf32, #tpu.memory_space<vmem>>, vector<1x8x32xf32>
    %6 = vector.shape_cast %5 : vector<1x8x32xf32> to vector<8x32xf32>
    %7 = tpu.iota {dimensions = array<i32: 0>} : vector<8x1xi32>
    %8 = vector.broadcast %1 : i32 to vector<8x1xi32>
    %9 = arith.addi %8, %7 : vector<8x1xi32>
    %c0_i32 = arith.constant 0 : i32
    %c8_i32_4 = arith.constant 8 : i32
    %10 = arith.addi %c0_i32, %c8_i32_4 : i32
    %c1_i32 = arith.constant 1 : i32
    %11 = scf.for %arg12 = %c0_i32 to %10 step %c1_i32 iter_args(%arg13 = %6) -> (vector<8x32xf32>)  : i32 {
      %c0_43 = arith.constant 0 : index
      %87 = arith.index_cast %arg12 : i32 to index
      %c0_44 = arith.constant 0 : index
      %88 = vector.load %arg2[%c0_43, %87, %c0_44] : memref<1x8x32xf32, #tpu.memory_space<vmem>>, vector<1x1x32xf32>
      %89 = vector.shape_cast %88 : vector<1x1x32xf32> to vector<1x32xf32>
      %90 = vector.broadcast %arg12 : i32 to vector<8x1xi32>
      %91 = arith.cmpi sle, %90, %9 : vector<8x1xi32>
      %92 = vector.broadcast %89 : vector<1x32xf32> to vector<8x32xf32>
      %93 = arith.maximumf %arg13, %92 : vector<8x32xf32>
      %94 = vector.shape_cast %91 : vector<8x1xi1> to vector<8x1xi1>
      %95 = vector.broadcast %94 : vector<8x1xi1> to vector<8x32xi1>
      %96 = arith.select %95, %6, %93 : vector<8x32xi1>, vector<8x32xf32>
      %97 = vector.shape_cast %96 : vector<8x32xf32> to vector<8x1x32xf32>
      %c0_45 = arith.constant 0 : index
      %98 = arith.index_cast %arg12 : i32 to index
      %c0_46 = arith.constant 0 : index
      %99 = vector.load %arg11[%c0_45, %98, %c0_46] : memref<8x8x32xf32, #tpu.memory_space<vmem>>, vector<8x1x32xf32>
      tpu.vector_store %arg11[%c0_45, %98, %c0_46], %97 {strides = array<i32>} : memref<8x8x32xf32, #tpu.memory_space<vmem>>, vector<8x1x32xf32>,
      scf.yield %96 : vector<8x32xf32>
    }
    %c8_i32_5 = arith.constant 8 : i32
    %c0_i32_6 = arith.constant 0 : i32
    %c8_i32_7 = arith.constant 8 : i32
    %12 = arith.addi %c0_i32_6, %c8_i32_7 : i32
    %c1_i32_8 = arith.constant 1 : i32
    %13 = scf.for %arg12 = %c0_i32_6 to %12 step %c1_i32_8 iter_args(%arg13 = %6) -> (vector<8x32xf32>)  : i32 {
      %c7_i32 = arith.constant 7 : i32
      %87 = arith.subi %c7_i32, %arg12 : i32
      %c0_43 = arith.constant 0 : index
      %88 = arith.index_cast %87 : i32 to index
      %c0_44 = arith.constant 0 : index
      %89 = vector.load %arg2[%c0_43, %88, %c0_44] : memref<1x8x32xf32, #tpu.memory_space<vmem>>, vector<1x1x32xf32>
      %90 = vector.shape_cast %89 : vector<1x1x32xf32> to vector<1x32xf32>
      %91 = vector.broadcast %87 : i32 to vector<8x1xi32>
      %92 = arith.cmpi sge, %91, %9 : vector<8x1xi32>
      %93 = vector.broadcast %90 : vector<1x32xf32> to vector<8x32xf32>
      %94 = arith.maximumf %arg13, %93 : vector<8x32xf32>
      %95 = vector.shape_cast %92 : vector<8x1xi1> to vector<8x1xi1>
      %96 = vector.broadcast %95 : vector<8x1xi1> to vector<8x32xi1>
      %97 = arith.select %96, %6, %94 : vector<8x32xi1>, vector<8x32xf32>
      %c0_45 = arith.constant 0 : index
      %98 = arith.index_cast %87 : i32 to index
      %c0_46 = arith.constant 0 : index
      %99 = vector.load %arg11[%c0_45, %98, %c0_46] : memref<8x8x32xf32, #tpu.memory_space<vmem>>, vector<8x1x32xf32>
      %100 = vector.shape_cast %97 : vector<8x32xf32> to vector<8x1x32xf32>
      %101 = arith.maximumf %99, %100 : vector<8x1x32xf32>
      %c0_47 = arith.constant 0 : index
      %102 = arith.index_cast %87 : i32 to index
      %c0_48 = arith.constant 0 : index
      %103 = vector.load %arg11[%c0_47, %102, %c0_48] : memref<8x8x32xf32, #tpu.memory_space<vmem>>, vector<8x1x32xf32>
      tpu.vector_store %arg11[%c0_47, %102, %c0_48], %101 {strides = array<i32>} : memref<8x8x32xf32, #tpu.memory_space<vmem>>, vector<8x1x32xf32>,
      scf.yield %97 : vector<8x32xf32>
    }
    %c8_i32_9 = arith.constant 8 : i32
    %c0_10 = arith.constant 0 : index
    %c0_11 = arith.constant 0 : index
    %14 = vector.load %arg5[%c0_10, %c0_11] : memref<32x32xf32, #tpu.memory_space<vmem>>, vector<32x32xf32>
    %cst = arith.constant dense<0.000000e+00> : vector<8x32xf32>
    %15 = tpu.matmul %6, %14, %cst {dimension_numbers = #tpu.dot_dimension_numbers<[1], [0], [0], [1], [0, 0, 1, 1], [], []>} : vector<8x32xf32>, vector<32x32xf32>, vector<8x32xf32> -> vector<8x32xf32>
    %c0_12 = arith.constant 0 : index
    %c0_13 = arith.constant 0 : index
    %16 = vector.load %arg6[%c0_12, %c0_13] : memref<32x32xf32, #tpu.memory_space<vmem>>, vector<32x32xf32>
    %cst_14 = arith.constant dense<0.000000e+00> : vector<8x32xf32>
    %17 = tpu.matmul %3, %16, %cst_14 {dimension_numbers = #tpu.dot_dimension_numbers<[1], [0], [0], [1], [0, 0, 1, 1], [], []>} : vector<8x32xf32>, vector<32x32xf32>, vector<8x32xf32> -> vector<8x32xf32>
    %c0_15 = arith.constant 0 : index
    %c0_16 = arith.constant 0 : index
    %c0_17 = arith.constant 0 : index
    %18 = vector.load %arg11[%c0_15, %c0_16, %c0_17] : memref<8x8x32xf32, #tpu.memory_space<vmem>>, vector<8x8x32xf32>
    %19 = vector.shape_cast %18 : vector<8x8x32xf32> to vector<64x32xf32>
    %c0_18 = arith.constant 0 : index
    %c0_19 = arith.constant 0 : index
    %20 = vector.load %arg7[%c0_18, %c0_19] : memref<32x32xf32, #tpu.memory_space<vmem>>, vector<32x32xf32>
    %cst_20 = arith.constant dense<0.000000e+00> : vector<64x32xf32>
    %21 = tpu.matmul %19, %20, %cst_20 {dimension_numbers = #tpu.dot_dimension_numbers<[1], [0], [0], [1], [0, 0, 1, 1], [], []>} : vector<64x32xf32>, vector<32x32xf32>, vector<64x32xf32> -> vector<64x32xf32>
    %22 = vector.shape_cast %21 : vector<64x32xf32> to vector<8x8x32xf32>
    %23 = vector.shape_cast %15 : vector<8x32xf32> to vector<8x1x32xf32>
    %24 = vector.shape_cast %17 : vector<8x32xf32> to vector<1x8x32xf32>
    %25 = vector.broadcast %23 : vector<8x1x32xf32> to vector<8x8x32xf32>
    %26 = vector.broadcast %24 : vector<1x8x32xf32> to vector<8x8x32xf32>
    %27 = arith.addf %25, %26 : vector<8x8x32xf32>
    %28 = arith.addf %27, %22 : vector<8x8x32xf32>
    %c0_21 = arith.constant 0 : index
    %c0_22 = arith.constant 0 : index
    %29 = vector.load %arg9[%c0_21, %c0_22] : memref<1x32xf32, #tpu.memory_space<vmem>>, vector<1x32xf32>
    %30 = vector.shape_cast %29 : vector<1x32xf32> to vector<1x1x32xf32>
    %31 = vector.broadcast %30 : vector<1x1x32xf32> to vector<8x8x32xf32>
    %32 = arith.addf %28, %31 : vector<8x8x32xf32>
    %c0_23 = arith.constant 0 : index
    %c0_24 = arith.constant 0 : index
    %33 = vector.load %arg4[%c0_23, %c0_24] : memref<32x128xf32, #tpu.memory_space<vmem>>, vector<32x128xf32>
    %cst_25 = arith.constant dense<0.000000e+00> : vector<8x128xf32>
    %34 = tpu.matmul %6, %33, %cst_25 {dimension_numbers = #tpu.dot_dimension_numbers<[1], [0], [0], [1], [0, 0, 1, 1], [], []>} : vector<8x32xf32>, vector<32x128xf32>, vector<8x128xf32> -> vector<8x128xf32>
    %35 = vector.extract_strided_slice %34 {offsets = [0, 0], sizes = [8, 32], strides = [1, 1]} : vector<8x128xf32> to vector<8x32xf32>
    %cst_26 = arith.constant dense<0.000000e+00> : vector<8x8xf32>
    %36 = tpu.matmul %35, %3, %cst_26 {dimension_numbers = #tpu.dot_dimension_numbers<[1], [1], [0], [0], [0, 0, 1, 0], [], []>} : vector<8x32xf32>, vector<8x32xf32>, vector<8x8xf32> -> vector<8x8xf32>
    %c0_27 = arith.constant 0 : index
    %c0_28 = arith.constant 0 : index
    %37 = vector.load %arg8[%c0_27, %c0_28] : memref<4x32xf32, #tpu.memory_space<vmem>>, vector<1x32xf32>
    %38 = vector.shape_cast %36 : vector<8x8xf32> to vector<8x8x1xf32>
    %39 = vector.shape_cast %37 : vector<1x32xf32> to vector<1x1x32xf32>
    %40 = vector.broadcast %38 : vector<8x8x1xf32> to vector<8x8x32xf32>
    %41 = vector.broadcast %39 : vector<1x1x32xf32> to vector<8x8x32xf32>
    %42 = arith.mulf %40, %41 : vector<8x8x32xf32>
    %43 = arith.addf %32, %42 : vector<8x8x32xf32>
    %44 = vector.extract_strided_slice %34 {offsets = [0, 32], sizes = [8, 32], strides = [1, 1]} : vector<8x128xf32> to vector<8x32xf32>
    %cst_29 = arith.constant dense<0.000000e+00> : vector<8x8xf32>
    %45 = tpu.matmul %44, %3, %cst_29 {dimension_numbers = #tpu.dot_dimension_numbers<[1], [1], [0], [0], [0, 0, 1, 0], [], []>} : vector<8x32xf32>, vector<8x32xf32>, vector<8x8xf32> -> vector<8x8xf32>
    %c1 = arith.constant 1 : index
    %c0_30 = arith.constant 0 : index
    %46 = vector.load %arg8[%c1, %c0_30] : memref<4x32xf32, #tpu.memory_space<vmem>>, vector<1x32xf32>
    %47 = vector.shape_cast %45 : vector<8x8xf32> to vector<8x8x1xf32>
    %48 = vector.shape_cast %46 : vector<1x32xf32> to vector<1x1x32xf32>
    %49 = vector.broadcast %47 : vector<8x8x1xf32> to vector<8x8x32xf32>
    %50 = vector.broadcast %48 : vector<1x1x32xf32> to vector<8x8x32xf32>
    %51 = arith.mulf %49, %50 : vector<8x8x32xf32>
    %52 = arith.addf %43, %51 : vector<8x8x32xf32>
    %53 = vector.extract_strided_slice %34 {offsets = [0, 64], sizes = [8, 32], strides = [1, 1]} : vector<8x128xf32> to vector<8x32xf32>
    %cst_31 = arith.constant dense<0.000000e+00> : vector<8x8xf32>
    %54 = tpu.matmul %53, %3, %cst_31 {dimension_numbers = #tpu.dot_dimension_numbers<[1], [1], [0], [0], [0, 0, 1, 0], [], []>} : vector<8x32xf32>, vector<8x32xf32>, vector<8x8xf32> -> vector<8x8xf32>
    %c2 = arith.constant 2 : index
    %c0_32 = arith.constant 0 : index
    %55 = vector.load %arg8[%c2, %c0_32] : memref<4x32xf32, #tpu.memory_space<vmem>>, vector<1x32xf32>
    %56 = vector.shape_cast %54 : vector<8x8xf32> to vector<8x8x1xf32>
    %57 = vector.shape_cast %55 : vector<1x32xf32> to vector<1x1x32xf32>
    %58 = vector.broadcast %56 : vector<8x8x1xf32> to vector<8x8x32xf32>
    %59 = vector.broadcast %57 : vector<1x1x32xf32> to vector<8x8x32xf32>
    %60 = arith.mulf %58, %59 : vector<8x8x32xf32>
    %61 = arith.addf %52, %60 : vector<8x8x32xf32>
    %62 = vector.extract_strided_slice %34 {offsets = [0, 96], sizes = [8, 32], strides = [1, 1]} : vector<8x128xf32> to vector<8x32xf32>
    %cst_33 = arith.constant dense<0.000000e+00> : vector<8x8xf32>
    %63 = tpu.matmul %62, %3, %cst_33 {dimension_numbers = #tpu.dot_dimension_numbers<[1], [1], [0], [0], [0, 0, 1, 0], [], []>} : vector<8x32xf32>, vector<8x32xf32>, vector<8x8xf32> -> vector<8x8xf32>
    %c3 = arith.constant 3 : index
    %c0_34 = arith.constant 0 : index
    %64 = vector.load %arg8[%c3, %c0_34] : memref<4x32xf32, #tpu.memory_space<vmem>>, vector<1x32xf32>
    %65 = vector.shape_cast %63 : vector<8x8xf32> to vector<8x8x1xf32>
    %66 = vector.shape_cast %64 : vector<1x32xf32> to vector<1x1x32xf32>
    %67 = vector.broadcast %65 : vector<8x8x1xf32> to vector<8x8x32xf32>
    %68 = vector.broadcast %66 : vector<1x1x32xf32> to vector<8x8x32xf32>
    %69 = arith.mulf %67, %68 : vector<8x8x32xf32>
    %70 = arith.addf %61, %69 : vector<8x8x32xf32>
    %71 = arith.mulf %70, %70 : vector<8x8x32xf32>
    %72 = arith.mulf %70, %71 : vector<8x8x32xf32>
    %cst_35 = arith.constant 4.471500e-02 : f32
    %73 = vector.broadcast %cst_35 : f32 to vector<8x8x32xf32>
    %74 = arith.mulf %73, %72 : vector<8x8x32xf32>
    %75 = arith.addf %70, %74 : vector<8x8x32xf32>
    %cst_36 = arith.constant 0.797884583 : f32
    %76 = vector.broadcast %cst_36 : f32 to vector<8x8x32xf32>
    %77 = arith.mulf %76, %75 : vector<8x8x32xf32>
    %78 = math.tanh %77 : vector<8x8x32xf32>
    %cst_37 = arith.constant 1.000000e+00 : f32
    %79 = vector.broadcast %cst_37 : f32 to vector<8x8x32xf32>
    %80 = arith.addf %79, %78 : vector<8x8x32xf32>
    %cst_38 = arith.constant 5.000000e-01 : f32
    %81 = vector.broadcast %cst_38 : f32 to vector<8x8x32xf32>
    %82 = arith.mulf %81, %80 : vector<8x8x32xf32>
    %83 = arith.mulf %70, %82 : vector<8x8x32xf32>
    %c0_39 = arith.constant 0 : index
    %c0_40 = arith.constant 0 : index
    %c0_41 = arith.constant 0 : index
    %c0_42 = arith.constant 0 : index
    %84 = vector.load %arg10[%c0_39, %c0_40, %c0_41, %c0_42] : memref<1x8x8x32xf32, #tpu.memory_space<vmem>>, vector<1x8x8x32xf32>
    %85 = vector.shape_cast %84 : vector<1x8x8x32xf32> to vector<8x8x32xf32>
    %86 = vector.shape_cast %83 : vector<8x8x32xf32> to vector<1x8x8x32xf32>
    tpu.vector_store %arg10[%c0_39, %c0_40, %c0_41, %c0_42], %86 {strides = array<i32>} : memref<1x8x8x32xf32, #tpu.memory_space<vmem>>, vector<1x8x8x32xf32>,
    return
  }
  func.func @transform_0(%arg0: i32, %arg1: i32) -> (i32, i32, i32) {
    %c0_i32 = arith.constant 0 : i32
    %c0_i32_0 = arith.constant 0 : i32
    %c0_i32_1 = arith.constant 0 : i32
    return %arg0, %c0_i32, %c0_i32_0 : i32, i32, i32
  }
  func.func @transform_1(%arg0: i32, %arg1: i32) -> (i32, i32, i32) {
    %c0_i32 = arith.constant 0 : i32
    %c0_i32_0 = arith.constant 0 : i32
    %c0_i32_1 = arith.constant 0 : i32
    return %arg0, %c0_i32, %c0_i32_0 : i32, i32, i32
  }
  func.func @transform_2(%arg0: i32, %arg1: i32) -> (i32, i32) {
    %c0_i32 = arith.constant 0 : i32
    %c0_i32_0 = arith.constant 0 : i32
    %c0_i32_1 = arith.constant 0 : i32
    return %c0_i32, %c0_i32_0 : i32, i32
  }
  func.func @transform_3(%arg0: i32, %arg1: i32) -> (i32, i32) {
    %c0_i32 = arith.constant 0 : i32
    %c0_i32_0 = arith.constant 0 : i32
    %c0_i32_1 = arith.constant 0 : i32
    return %c0_i32, %c0_i32_0 : i32, i32
  }
  func.func @transform_4(%arg0: i32, %arg1: i32) -> (i32, i32) {
    %c0_i32 = arith.constant 0 : i32
    %c0_i32_0 = arith.constant 0 : i32
    %c0_i32_1 = arith.constant 0 : i32
    return %c0_i32, %c0_i32_0 : i32, i32
  }
  func.func @transform_5(%arg0: i32, %arg1: i32) -> (i32, i32) {
    %c0_i32 = arith.constant 0 : i32
    %c0_i32_0 = arith.constant 0 : i32
    %c0_i32_1 = arith.constant 0 : i32
    return %c0_i32, %c0_i32_0 : i32, i32
  }
  func.func @transform_6(%arg0: i32, %arg1: i32) -> (i32, i32) {
    %c0_i32 = arith.constant 0 : i32
    %c0_i32_0 = arith.constant 0 : i32
    %c0_i32_1 = arith.constant 0 : i32
    return %c0_i32, %c0_i32_0 : i32, i32
  }
  func.func @transform_7(%arg0: i32, %arg1: i32) -> (i32, i32) {
    %c0_i32 = arith.constant 0 : i32
    %c0_i32_0 = arith.constant 0 : i32
    %c0_i32_1 = arith.constant 0 : i32
    return %c0_i32, %c0_i32_0 : i32, i32
  }
  func.func @transform_8(%arg0: i32, %arg1: i32) -> (i32, i32, i32, i32) {
    %c0_i32 = arith.constant 0 : i32
    %c0_i32_0 = arith.constant 0 : i32
    %c0_i32_1 = arith.constant 0 : i32
    return %arg0, %arg1, %c0_i32, %c0_i32_0 : i32, i32, i32, i32
  }
}

</mosaic_0001>

<llo_original>
// kernel: tpu_custom_call.1
$region0: #{tpu_custom_call.1}
  #allocation0 [shape = 'u32[]', space=smem, size = 0x4, offset = 0x4, fixed_abs, tag = 'smem constant byte address 0x4 - core index']
  #allocation1 [shape = 'u32[72,128]{1,0:T(1,128)}', space=vmem, size = 0x9000, scoped, tag = 'internal scratch']
  #allocation2 [shape = 'f32[8,8,32]{2,1,0:T(8,128)}', space=vmem, size = 0x8000, scoped, tag = 'scratch operand']
  %s0 = inlined_call_operand.hbm [shape: f32[2,8,32], index: 0, kind: input, shape index: {}]
  %s1 = inlined_call_operand.hbm [shape: f32[2,8,32], index: 1, kind: input, shape index: {}]
  %s2 = inlined_call_operand.hbm [shape: f32[32,128], index: 2, kind: input, shape index: {}]
  %s3 = inlined_call_operand.hbm [shape: f32[32,32], index: 3, kind: input, shape index: {}]
  %s4 = inlined_call_operand.hbm [shape: f32[32,32], index: 4, kind: input, shape index: {}]
  %s5 = inlined_call_operand.hbm [shape: f32[32,32], index: 5, kind: input, shape index: {}]
  %s6 = inlined_call_operand.vmem [shape: f32[4,32], index: 6, kind: input, shape index: {}]
  %s7 = inlined_call_operand.vmem [shape: f32[1,32], index: 7, kind: input, shape index: {}]
  %s8 = inlined_call_operand.hbm [shape: f32[2,8,8,32], index: 8, kind: output, shape index: {}]
  %s9 = sld [smem:[#allocation0]]
  $region103: #{tpu_custom_call.1} parent=0
    _
  %s11 = ssub.s32 1, %s9
  %s12 = scalar_select 0, %s11, %s9
  $region1: #{tpu_custom_call.1} parent=0
    #allocation3 [shape = 'u8[8192]{0}', space=vmem, size = 0x2000, scoped, tag = 'input window, operand 0']
    #allocation4 [shape = 's32[2]{0}', space=sflag, size = 0x8, scoped, tag = 'scoped memory for tpu_custom_call.1']
    #allocation5 [shape = 's32[2]{0}', space=sflag, size = 0x8, scoped, tag = 'scoped memory for tpu_custom_call.1']
    #allocation6 [shape = 'u8[8192]{0}', space=vmem, size = 0x2000, scoped, tag = 'input window, operand 1']
    #allocation7 [shape = 's32[2]{0}', space=sflag, size = 0x8, scoped, tag = 'scoped memory for tpu_custom_call.1']
    #allocation8 [shape = 'u8[16384]{0}', space=vmem, size = 0x4000, scoped, tag = 'input window, operand 2, single buffered']
    #allocation9 [shape = 'u8[16384]{0}', space=vmem, size = 0x4000, scoped, tag = 'input window, operand 3, single buffered']
    #allocation10 [shape = 's32[1]{0}', space=sflag, size = 0x4, scoped, tag = 'scoped memory for tpu_custom_call.1']
    #allocation11 [shape = 'u8[16384]{0}', space=vmem, size = 0x4000, scoped, tag = 'input window, operand 4, single buffered']
    #allocation12 [shape = 'u8[16384]{0}', space=vmem, size = 0x4000, scoped, tag = 'input window, operand 5, single buffered']
    #allocation13 [shape = 's32[1]{0}', space=sflag, size = 0x4, scoped, tag = 'scoped memory for tpu_custom_call.1']
    #allocation14 [shape = 'u8[65536]{0}', space=vmem, size = 0x10000, scoped, tag = 'output window, operand 0']
    %13 = vsyncpa [#allocation4], 0
    %s14 = scalar_lea.sflag [#allocation4], 1
    %15 = vsyncpa %s14, 0
    %16 = vsyncpa [#allocation7], 0
    %s17 = scalar_lea.sflag [#allocation7], 1
    %18 = vsyncpa %s17, 0
    %19 = vsyncpa [#allocation10], 0
    %20 = vsyncpa [#allocation13], 0
    %21 = vsyncpa [#allocation5], 0
    %s22 = scalar_lea.sflag [#allocation5], 1
    %23 = vsyncpa %s22, 0
    loop: start=0, step=1, limit=4
    $region2: #{tpu_custom_call.1} parent=1 // loop_pre_header
      _
    $region3: #{tpu_custom_call.1} parent=1 // loop_header
      %s25 = sphi 0, %s29
      %p26 = scmp.ge.s32.totalorder %s25, 4
      %s32 = sphi 0, %s44
      %s33 = sphi 0, %s40
      %s34 = sphi 0, %s32
      %s35 = sphi 0, %s33
      %s36 = sphi 0, %s34
      %s37 = sphi 0, %s35
      %s47 = sphi 0, %s49
      %s50 = sphi 0, %s47
      %s51 = sphi 0, %s50
      %s67 = sphi 0, %s51
      %s73 = sphi 0, %s75
      %s76 = sphi 0, %s73
      %s77 = sphi 0, %s76
      %s93 = sphi 0, %s77
      %s97 = sphi 0, %s97
      %s99 = sphi 0, %s97
      %s100 = sphi 0, %s99
      %s114 = sphi 0, %s100
      %s118 = sphi 0, %s118
      %s120 = sphi 0, %s118
      %s121 = sphi 0, %s120
      %s135 = sphi 0, %s121
      %s139 = sphi 0, %s139
      %s141 = sphi 0, %s139
      %s142 = sphi 0, %s141
      %s156 = sphi 0, %s142
      %s160 = sphi 0, %s160
      %s162 = sphi 0, %s160
      %s163 = sphi 0, %s162
      %s177 = sphi 0, %s163
      %s181 = sphi 0, %s181
      %s183 = sphi 0, %s181
      %s184 = sphi 0, %s183
      %s198 = sphi 0, %s184
      %s202 = sphi 0, %s202
      %s204 = sphi 0, %s202
      %s205 = sphi 0, %s204
      %s219 = sphi 0, %s205
      %s227 = sphi 0, %s229
      %s230 = sphi 0, %s227
      %s231 = sphi 0, %s230
      %s247 = sphi 0, %s231
    $region4: #{tpu_custom_call.1} parent=1 // loop_header_branch
      %28 = sbr.rel (%p26) target = $region8
    $region5: #{tpu_custom_call.1} parent=1 // loop_body
      %s30 = ssub.s32 %s25, 1
      %s31 = ssub.s32 %s25, 2
      %s38 = sadd.s32 1, %s33
      %p39 = scmp.ge.s32.totalorder %s38, 1
      %s40 = scalar_select %p39, 0, %s38
      %s41 = sadd.s32 1, %s32
      %s42 = scalar_select %p39, %s41, %s32
      %p43 = scmp.ge.s32.totalorder %s42, 2
      %s44 = scalar_select %p43, 0, %s42
      %s45 = ssub.s32 %s32, %s44
      %p46 = scmp.eq.s32.totalorder %s45, 0
      %s48 = sadd.s32 %s47, 1
      %s49 = scalar_select %p46, %s47, %s48
      %p52 = pneg %p46
      %p53 = scmp.eq.s32.totalorder %s25, 1
      %p54 = por %p52, %p53
      %p55 = scmp.ne.s32.totalorder %s47, %s50
      %p56 = scmp.eq.s32.totalorder %s25, 0
      %p57 = por %p55, %p56
      %p58 = scmp.ne.s32.totalorder %s47, %s50
      %p59 = scmp.eq.s32.totalorder %s30, 1
      %p60 = por %p58, %p59
      %p61 = scmp.ne.s32.totalorder %s50, %s51
      %p62 = scmp.eq.s32.totalorder %s30, 0
      %p63 = por %p61, %p62
      %p64 = scmp.ne.s32.totalorder %s50, %s51
      %p65 = scmp.eq.s32.totalorder %s31, 1
      %p66 = por %p64, %p65
      %p68 = scmp.ne.s32.totalorder %s51, %s67
      %p69 = scmp.eq.s32.totalorder %s31, 0
      %p70 = por %p68, %p69
      %s71 = ssub.s32 %s32, %s44
      %p72 = scmp.eq.s32.totalorder %s71, 0
      %s74 = sadd.s32 %s73, 1
      %s75 = scalar_select %p72, %s73, %s74
      %p78 = pneg %p72
      %p79 = scmp.eq.s32.totalorder %s25, 1
      %p80 = por %p78, %p79
      %p81 = scmp.ne.s32.totalorder %s73, %s76
      %p82 = scmp.eq.s32.totalorder %s25, 0
      %p83 = por %p81, %p82
      %p84 = scmp.ne.s32.totalorder %s73, %s76
      %p85 = scmp.eq.s32.totalorder %s30, 1
      %p86 = por %p84, %p85
      %p87 = scmp.ne.s32.totalorder %s76, %s77
      %p88 = scmp.eq.s32.totalorder %s30, 0
      %p89 = por %p87, %p88
      %p90 = scmp.ne.s32.totalorder %s76, %s77
      %p91 = scmp.eq.s32.totalorder %s31, 1
      %p92 = por %p90, %p91
      %p94 = scmp.ne.s32.totalorder %s77, %s93
      %p95 = scmp.eq.s32.totalorder %s31, 0
      %p96 = por %p94, %p95
      %s98 = sadd.s32 %s97, 1
      %p101 = scmp.eq.s32.totalorder %s25, 1
      %p102 = scmp.ne.s32.totalorder %s97, %s99
      %p103 = scmp.eq.s32.totalorder %s25, 0
      %p104 = por %p102, %p103
      %p105 = scmp.ne.s32.totalorder %s97, %s99
      %p106 = scmp.eq.s32.totalorder %s30, 1
      %p107 = por %p105, %p106
      %p108 = scmp.ne.s32.totalorder %s99, %s100
      %p109 = scmp.eq.s32.totalorder %s30, 0
      %p110 = por %p108, %p109
      %p111 = scmp.ne.s32.totalorder %s99, %s100
      %p112 = scmp.eq.s32.totalorder %s31, 1
      %p113 = por %p111, %p112
      %p115 = scmp.ne.s32.totalorder %s100, %s114
      %p116 = scmp.eq.s32.totalorder %s31, 0
      %p117 = por %p115, %p116
      %s119 = sadd.s32 %s118, 1
      %p122 = scmp.eq.s32.totalorder %s25, 1
      %p123 = scmp.ne.s32.totalorder %s118, %s120
      %p124 = scmp.eq.s32.totalorder %s25, 0
      %p125 = por %p123, %p124
      %p126 = scmp.ne.s32.totalorder %s118, %s120
      %p127 = scmp.eq.s32.totalorder %s30, 1
      %p128 = por %p126, %p127
      %p129 = scmp.ne.s32.totalorder %s120, %s121
      %p130 = scmp.eq.s32.totalorder %s30, 0
      %p131 = por %p129, %p130
      %p132 = scmp.ne.s32.totalorder %s120, %s121
      %p133 = scmp.eq.s32.totalorder %s31, 1
      %p134 = por %p132, %p133
      %p136 = scmp.ne.s32.totalorder %s121, %s135
      %p137 = scmp.eq.s32.totalorder %s31, 0
      %p138 = por %p136, %p137
      %s140 = sadd.s32 %s139, 1
      %p143 = scmp.eq.s32.totalorder %s25, 1
      %p144 = scmp.ne.s32.totalorder %s139, %s141
      %p145 = scmp.eq.s32.totalorder %s25, 0
      %p146 = por %p144, %p145
      %p147 = scmp.ne.s32.totalorder %s139, %s141
      %p148 = scmp.eq.s32.totalorder %s30, 1
      %p149 = por %p147, %p148
      %p150 = scmp.ne.s32.totalorder %s141, %s142
      %p151 = scmp.eq.s32.totalorder %s30, 0
      %p152 = por %p150, %p151
      %p153 = scmp.ne.s32.totalorder %s141, %s142
      %p154 = scmp.eq.s32.totalorder %s31, 1
      %p155 = por %p153, %p154
      %p157 = scmp.ne.s32.totalorder %s142, %s156
      %p158 = scmp.eq.s32.totalorder %s31, 0
      %p159 = por %p157, %p158
      %s161 = sadd.s32 %s160, 1
      %p164 = scmp.eq.s32.totalorder %s25, 1
      %p165 = scmp.ne.s32.totalorder %s160, %s162
      %p166 = scmp.eq.s32.totalorder %s25, 0
      %p167 = por %p165, %p166
      %p168 = scmp.ne.s32.totalorder %s160, %s162
      %p169 = scmp.eq.s32.totalorder %s30, 1
      %p170 = por %p168, %p169
      %p171 = scmp.ne.s32.totalorder %s162, %s163
      %p172 = scmp.eq.s32.totalorder %s30, 0
      %p173 = por %p171, %p172
      %p174 = scmp.ne.s32.totalorder %s162, %s163
      %p175 = scmp.eq.s32.totalorder %s31, 1
      %p176 = por %p174, %p175
      %p178 = scmp.ne.s32.totalorder %s163, %s177
      %p179 = scmp.eq.s32.totalorder %s31, 0
      %p180 = por %p178, %p179
      %s182 = sadd.s32 %s181, 1
      %p185 = scmp.eq.s32.totalorder %s25, 1
      %p186 = scmp.ne.s32.totalorder %s181, %s183
      %p187 = scmp.eq.s32.totalorder %s25, 0
      %p188 = por %p186, %p187
      %p189 = scmp.ne.s32.totalorder %s181, %s183
      %p190 = scmp.eq.s32.totalorder %s30, 1
      %p191 = por %p189, %p190
      %p192 = scmp.ne.s32.totalorder %s183, %s184
      %p193 = scmp.eq.s32.totalorder %s30, 0
      %p194 = por %p192, %p193
      %p195 = scmp.ne.s32.totalorder %s183, %s184
      %p196 = scmp.eq.s32.totalorder %s31, 1
      %p197 = por %p195, %p196
      %p199 = scmp.ne.s32.totalorder %s184, %s198
      %p200 = scmp.eq.s32.totalorder %s31, 0
      %p201 = por %p199, %p200
      %s203 = sadd.s32 %s202, 1
      %p206 = scmp.eq.s32.totalorder %s25, 1
      %p207 = scmp.ne.s32.totalorder %s202, %s204
      %p208 = scmp.eq.s32.totalorder %s25, 0
      %p209 = por %p207, %p208
      %p210 = scmp.ne.s32.totalorder %s202, %s204
      %p211 = scmp.eq.s32.totalorder %s30, 1
      %p212 = por %p210, %p211
      %p213 = scmp.ne.s32.totalorder %s204, %s205
      %p214 = scmp.eq.s32.totalorder %s30, 0
      %p215 = por %p213, %p214
      %p216 = scmp.ne.s32.totalorder %s204, %s205
      %p217 = scmp.eq.s32.totalorder %s31, 1
      %p218 = por %p216, %p217
      %p220 = scmp.ne.s32.totalorder %s205, %s219
      %p221 = scmp.eq.s32.totalorder %s31, 0
      %p222 = por %p220, %p221
      %s223 = ssub.s32 %s32, %s44
      %s224 = ssub.s32 %s33, %s40
      %s225 = sor.u32 %s223, %s224
      %p226 = scmp.eq.s32.totalorder %s225, 0
      %s228 = sadd.s32 %s227, 1
      %s229 = scalar_select %p226, %s227, %s228
      %p232 = pneg %p226
      %p233 = scmp.eq.s32.totalorder %s25, 1
      %p234 = por %p232, %p233
      %p235 = scmp.ne.s32.totalorder %s227, %s230
      %p236 = scmp.eq.s32.totalorder %s25, 0
      %p237 = por %p235, %p236
      %p238 = scmp.ne.s32.totalorder %s227, %s230
      %p239 = scmp.eq.s32.totalorder %s30, 1
      %p240 = por %p238, %p239
      %p241 = scmp.ne.s32.totalorder %s230, %s231
      %p242 = scmp.eq.s32.totalorder %s30, 0
      %p243 = por %p241, %p242
      %p244 = scmp.ne.s32.totalorder %s230, %s231
      %p245 = scmp.eq.s32.totalorder %s31, 1
      %p246 = por %p244, %p245
      %p248 = scmp.ne.s32.totalorder %s231, %s247
      %p249 = scmp.eq.s32.totalorder %s31, 0
      %p250 = por %p248, %p249
      %p251 = scmp.le.s32.totalorder 1, %s25
      %p252 = scmp.lt.s32.totalorder %s25, 3
      %p253 = pnand %p251, %p252
      %p254 = pneg %p253
      // Predicated region
      $region9: #{tpu_custom_call.1} parent=5 // pred_check
        _
      $region10: #{tpu_custom_call.1} parent=5 // pred_check_branch
        %256 = sbr.rel (%p253) target = $region12
      $region11: #{tpu_custom_call.1} parent=5 // pred_region
        %s257 = ssub.s32 %s25, 1
        // Predicated region
        $region13: #{tpu_custom_call.1} parent=11 // pred_check
          %p258 = pneg %p110
        $region14: #{tpu_custom_call.1} parent=11 // pred_check_branch
          %260 = sbr.rel (%p258) target = $region16
        $region15: #{tpu_custom_call.1} parent=11 // pred_region
          %262 = vsyncadd [#allocation7], 0
          %s263 = sshll.u32 %s2, 4
          %s264 = int_to_ptr.hbm [resolvable:$true] %s263
          %s265 = sshll.u32 [#allocation8], 4
          %s266 = int_to_ptr.vmem [resolvable:$true] %s265
          %271 = dma.hbm_to_vmem [thread:$0]  %s264, 512, %s266, [#allocation7], 128, 128, 8
        $region16: #{tpu_custom_call.1} parent=11 // pred_fallthru
          _
        // Predicated region
        $region17: #{tpu_custom_call.1} parent=11 // pred_check
          %p272 = pneg %p131
        $region18: #{tpu_custom_call.1} parent=11 // pred_check_branch
          %274 = sbr.rel (%p272) target = $region20
        $region19: #{tpu_custom_call.1} parent=11 // pred_region
          %276 = vsyncadd [#allocation10], 0
          %s277 = sshll.u32 %s3, 4
          %s278 = int_to_ptr.hbm [resolvable:$true] %s277
          %s279 = sshll.u32 [#allocation9], 4
          %s280 = int_to_ptr.vmem [resolvable:$true] %s279
          %285 = dma.hbm_to_vmem [thread:$0]  %s278, 512, %s280, [#allocation10], 128, 128, 8
        $region20: #{tpu_custom_call.1} parent=11 // pred_fallthru
          _
        // Predicated region
        $region21: #{tpu_custom_call.1} parent=11 // pred_check
          %p286 = pneg %p152
        $region22: #{tpu_custom_call.1} parent=11 // pred_check_branch
          %288 = sbr.rel (%p286) target = $region24
        $region23: #{tpu_custom_call.1} parent=11 // pred_region
          %290 = vsyncadd [#allocation10], 0
          %s291 = sshll.u32 %s4, 4
          %s292 = int_to_ptr.hbm [resolvable:$true] %s291
          %s293 = sshll.u32 [#allocation11], 4
          %s294 = int_to_ptr.vmem [resolvable:$true] %s293
          %299 = dma.hbm_to_vmem [thread:$0]  %s292, 512, %s294, [#allocation10], 128, 128, 8
        $region24: #{tpu_custom_call.1} parent=11 // pred_fallthru
          _
        // Predicated region
        $region25: #{tpu_custom_call.1} parent=11 // pred_check
          %p300 = pneg %p173
        $region26: #{tpu_custom_call.1} parent=11 // pred_check_branch
          %302 = sbr.rel (%p300) target = $region28
        $region27: #{tpu_custom_call.1} parent=11 // pred_region
          %304 = vsyncadd [#allocation13], 0
          %s305 = sshll.u32 %s5, 4
          %s306 = int_to_ptr.hbm [resolvable:$true] %s305
          %s307 = sshll.u32 [#allocation12], 4
          %s308 = int_to_ptr.vmem [resolvable:$true] %s307
          %313 = dma.hbm_to_vmem [thread:$0]  %s306, 512, %s308, [#allocation13], 128, 128, 8
        $region28: #{tpu_custom_call.1} parent=11 // pred_fallthru
          _
        // Predicated region
        $region29: #{tpu_custom_call.1} parent=11 // pred_check
          %p314 = pneg %p194
        $region30: #{tpu_custom_call.1} parent=11 // pred_check_branch
          %316 = sbr.rel (%p314) target = $region32
        $region31: #{tpu_custom_call.1} parent=11 // pred_region
          _
        $region32: #{tpu_custom_call.1} parent=11 // pred_fallthru
          _
        // Predicated region
        $region33: #{tpu_custom_call.1} parent=11 // pred_check
          %p317 = pneg %p215
        $region34: #{tpu_custom_call.1} parent=11 // pred_check_branch
          %319 = sbr.rel (%p317) target = $region36
        $region35: #{tpu_custom_call.1} parent=11 // pred_region
          _
        $region36: #{tpu_custom_call.1} parent=11 // pred_fallthru
          _
      $region12: #{tpu_custom_call.1} parent=5 // pred_fallthru
        _
      %p320 = scmp.lt.s32.totalorder %s25, 2
      // Predicated region
      $region37: #{tpu_custom_call.1} parent=5 // pred_check
        %p321 = pneg %p320
      $region38: #{tpu_custom_call.1} parent=5 // pred_check_branch
        %323 = sbr.rel (%p321) target = $region40
      $region39: #{tpu_custom_call.1} parent=5 // pred_region
        // Predicated region
        $region41: #{tpu_custom_call.1} parent=39 // pred_check
          %p324 = pneg %p57
        $region42: #{tpu_custom_call.1} parent=39 // pred_check_branch
          %326 = sbr.rel (%p324) target = $region44
        $region43: #{tpu_custom_call.1} parent=39 // pred_region
          %s327 = sand.u32 %s47, 1
          %s328 = scalar_lea.sflag [#allocation4], %s327
          %s329 = sand.u32 %s47, 1
          %s330 = smul.addr %s329, 8
          %s331 = scalar_lea.vmem [#allocation3], %s330
          %333 = vsyncadd %s328, 0
          %s334 = smul.addr %s32, 8
          %s335 = scalar_lea.hbm %s0, %s334
          %s337 = sshll.u32 %s335, 4
          %s338 = int_to_ptr.hbm [resolvable:$true] %s337
          %s339 = sshll.u32 %s331, 4
          %s340 = int_to_ptr.vmem [resolvable:$true] %s339
          %342 = dma.hbm_to_vmem [thread:$0]  %s338, 128, %s340, %s328
        $region44: #{tpu_custom_call.1} parent=39 // pred_fallthru
          _
        // Predicated region
        $region45: #{tpu_custom_call.1} parent=39 // pred_check
          %p343 = pneg %p83
        $region46: #{tpu_custom_call.1} parent=39 // pred_check_branch
          %345 = sbr.rel (%p343) target = $region48
        $region47: #{tpu_custom_call.1} parent=39 // pred_region
          %s346 = sand.u32 %s25, 1
          %s347 = scalar_lea.sflag [#allocation7], %s346
          %s348 = sand.u32 %s73, 1
          %s349 = smul.addr %s348, 8
          %s350 = scalar_lea.vmem [#allocation6], %s349
          %352 = vsyncadd %s347, 0
          %s353 = smul.addr %s32, 8
          %s354 = scalar_lea.hbm %s1, %s353
          %s356 = sshll.u32 %s354, 4
          %s357 = int_to_ptr.hbm [resolvable:$true] %s356
          %s358 = sshll.u32 %s350, 4
          %s359 = int_to_ptr.vmem [resolvable:$true] %s358
          %361 = dma.hbm_to_vmem [thread:$0]  %s357, 128, %s359, %s347
        $region48: #{tpu_custom_call.1} parent=39 // pred_fallthru
          _
      $region40: #{tpu_custom_call.1} parent=5 // pred_fallthru
        _
      %p362 = scmp.le.s32.totalorder 1, %s25
      %p363 = scmp.lt.s32.totalorder %s25, 3
      %p364 = pnand %p362, %p363
      %p365 = pneg %p364
      // Predicated region
      $region49: #{tpu_custom_call.1} parent=5 // pred_check
        _
      $region50: #{tpu_custom_call.1} parent=5 // pred_check_branch
        %367 = sbr.rel (%p364) target = $region52
      $region51: #{tpu_custom_call.1} parent=5 // pred_region
        %s368 = ssub.s32 %s25, 1
        %s369 = sand.u32 %s50, 1
        %s370 = scalar_lea.sflag [#allocation4], %s369
        %s371 = sand.u32 %s50, 1
        %s372 = smul.addr %s371, 8
        %s373 = scalar_lea.vmem [#allocation3], %s372
        // Predicated region
        $region53: #{tpu_custom_call.1} parent=51 // pred_check
          %p374 = pneg %p63
        $region54: #{tpu_custom_call.1} parent=51 // pred_check_branch
          %376 = sbr.rel (%p374) target = $region56
        $region55: #{tpu_custom_call.1} parent=51 // pred_region
          %378 = dma.done %s370, 128
        $region56: #{tpu_custom_call.1} parent=51 // pred_fallthru
          _
        %s379 = sand.u32 %s30, 1
        %s380 = scalar_lea.sflag [#allocation7], %s379
        %s381 = sand.u32 %s76, 1
        %s382 = smul.addr %s381, 8
        %s383 = scalar_lea.vmem [#allocation6], %s382
        // Predicated region
        $region57: #{tpu_custom_call.1} parent=51 // pred_check
          %p384 = pneg %p89
        $region58: #{tpu_custom_call.1} parent=51 // pred_check_branch
          %386 = sbr.rel (%p384) target = $region60
        $region59: #{tpu_custom_call.1} parent=51 // pred_region
          %388 = dma.done %s380, 128
        $region60: #{tpu_custom_call.1} parent=51 // pred_fallthru
          _
        // Predicated region
        $region61: #{tpu_custom_call.1} parent=51 // pred_check
          %p389 = pneg %p110
        $region62: #{tpu_custom_call.1} parent=51 // pred_check_branch
          %391 = sbr.rel (%p389) target = $region64
        $region63: #{tpu_custom_call.1} parent=51 // pred_region
          %393 = dma.done [#allocation7], 512
        $region64: #{tpu_custom_call.1} parent=51 // pred_fallthru
          _
        // Predicated region
        $region65: #{tpu_custom_call.1} parent=51 // pred_check
          %p394 = pneg %p131
        $region66: #{tpu_custom_call.1} parent=51 // pred_check_branch
          %396 = sbr.rel (%p394) target = $region68
        $region67: #{tpu_custom_call.1} parent=51 // pred_region
          %398 = dma.done [#allocation10], 512
        $region68: #{tpu_custom_call.1} parent=51 // pred_fallthru
          _
        // Predicated region
        $region69: #{tpu_custom_call.1} parent=51 // pred_check
          %p399 = pneg %p152
        $region70: #{tpu_custom_call.1} parent=51 // pred_check_branch
          %401 = sbr.rel (%p399) target = $region72
        $region71: #{tpu_custom_call.1} parent=51 // pred_region
          %403 = dma.done [#allocation10], 512
        $region72: #{tpu_custom_call.1} parent=51 // pred_fallthru
          _
        // Predicated region
        $region73: #{tpu_custom_call.1} parent=51 // pred_check
          %p404 = pneg %p173
        $region74: #{tpu_custom_call.1} parent=51 // pred_check_branch
          %406 = sbr.rel (%p404) target = $region76
        $region75: #{tpu_custom_call.1} parent=51 // pred_region
          %408 = dma.done [#allocation13], 512
        $region76: #{tpu_custom_call.1} parent=51 // pred_fallthru
          _
        %s409 = sand.u32 %s50, 1
        %s410 = scalar_lea.sflag [#allocation4], %s409
        %s411 = sand.u32 %s50, 1
        %s412 = smul.addr %s411, 8
        %s413 = scalar_lea.vmem [#allocation3], %s412
        %p414 = pneg %p63
        %p415 = pneg %p60
        %s416 = sand.u32 %s30, 1
        %s417 = scalar_lea.sflag [#allocation7], %s416
        %s418 = sand.u32 %s76, 1
        %s419 = smul.addr %s418, 8
        %s420 = scalar_lea.vmem [#allocation6], %s419
        %p421 = pneg %p89
        %p422 = pneg %p86
        %p423 = pneg %p110
        %p424 = pneg %p107
        %p425 = pneg %p131
        %p426 = pneg %p128
        %p427 = pneg %p152
        %p428 = pneg %p149
        %p429 = pneg %p173
        %p430 = pneg %p170
        %p431 = pneg %p194
        %p432 = pneg %p191
        %p433 = pneg %p215
        %p434 = pneg %p212
        %p435 = pneg %p243
        %p436 = pneg %p240
        %s437 = sand.u32 %s230, 1
        %s438 = scalar_lea.sflag [#allocation5], %s437
        %s439 = sand.u32 %s230, 1
        %s440 = smul.addr %s439, 64
        %s441 = scalar_lea.vmem [#allocation14], %s440
        %s442 = smul.u32 8, %s35
        %s443 = smul.u32 %s35, 8
        %v444 = vld [vmem:[%s383] sm:$0xff]
        %s445 = scalar_lea.vmem %s373, %s443 [#allocation3]
        %v446 = vld [vmem:[%s445] sm:$0xff]
        %v447 = vlaneseq
        %v448 = vshrl.u32 %v447, 7
        %v449 = vstv %s443
        %v450 = vadd.s32 %v449, %v448
        loop: start=0, step=1, limit=8
        $region77: #{tpu_custom_call.1} parent=51 // loop_pre_header
          _
        $region78: #{tpu_custom_call.1} parent=51 // loop_header
          %s452 = sphi 0, %s456
          %p453 = scmp.ge.s32.totalorder %s452, 8
          %v457 = vphi %v446, %v466
        $region79: #{tpu_custom_call.1} parent=51 // loop_header_branch
          %455 = sbr.rel (%p453) target = $region83
        $region80: #{tpu_custom_call.1} parent=51 // loop_body
          %s458 = scalar_lea.vmem %s373, %s452 [#allocation3]
          %v459 = vld [vmem:[%s458] sm:$0x1]
          %v460 = vstv %s452
          %vm461 = vcmp.le.s32.totalorder %v460, %v450
          %v462 = vperm.slane %v459, 0
          %v463 = vmax.f32 %v457, %v462
          %v464 = vsel %vm461, 1, 0
          %vm465 = vcmp.eq.s32.totalorder %v464, 1
          %v466 = vsel %vm465, %v446, %v463
          %v468 = vrot.slane %v466, 1
          %v469 = vrot.slane %v466, 2
          %v470 = vrot.slane %v466, 3
          %v471 = vrot.slane %v466, 4
          %v472 = vrot.slane %v466, 5
          %v473 = vrot.slane %v466, 6
          %v474 = vrot.slane %v466, 7
          %s482 = scalar_lea.vmem [#allocation2], %s452
          %vm483 = vcmask 253952
          %484 = vst.msk [vmem:[%s482] sm:$0x1] %vm483, %v466
          %485 = vst.msk [vmem:[%s482 + $0x8] sm:$0x1] %vm483, %v468
          %486 = vst.msk [vmem:[%s482 + $0x10] sm:$0x1] %vm483, %v469
          %487 = vst.msk [vmem:[%s482 + $0x18] sm:$0x1] %vm483, %v470
          %488 = vst.msk [vmem:[%s482 + $0x20] sm:$0x1] %vm483, %v471
          %489 = vst.msk [vmem:[%s482 + $0x28] sm:$0x1] %vm483, %v472
          %490 = vst.msk [vmem:[%s482 + $0x30] sm:$0x1] %vm483, %v473
          %491 = vst.msk [vmem:[%s482 + $0x38] sm:$0x1] %vm483, %v474
        $region81: #{tpu_custom_call.1} parent=51 // loop_footer
          %s456 = sadd.s32 1, %s452
        $region82: #{tpu_custom_call.1} parent=51 // loop_footer_branch
          %451 = sbr.rel target = $region78
        $region83: #{tpu_custom_call.1} parent=51 // loop_exit
          _
        loop: start=0, step=1, limit=8
        $region84: #{tpu_custom_call.1} parent=51 // loop_pre_header
          _
        $region85: #{tpu_custom_call.1} parent=51 // loop_header
          %s493 = sphi 0, %s497
          %p494 = scmp.ge.s32.totalorder %s493, 8
          %v498 = vphi %v446, %v508
        $region86: #{tpu_custom_call.1} parent=51 // loop_header_branch
          %496 = sbr.rel (%p494) target = $region90
        $region87: #{tpu_custom_call.1} parent=51 // loop_body
          %s499 = ssub.s32 7, %s493
          %s500 = scalar_lea.vmem %s373, %s499 [#allocation3]
          %v501 = vld [vmem:[%s500] sm:$0x1]
          %v502 = vstv %s499
          %vm503 = vcmp.ge.s32.totalorder %v502, %v450
          %v504 = vperm.slane %v501, 0
          %v505 = vmax.f32 %v498, %v504
          %v506 = vsel %vm503, 1, 0
          %vm507 = vcmp.eq.s32.totalorder %v506, 1
          %v508 = vsel %vm507, %v446, %v505
          %s509 = scalar_lea.vmem [#allocation2], %s499
          %v510 = vld [vmem:[%s509] sm:$0x1]
          %v511 = vld [vmem:[%s509 + $0x8] sm:$0x1]
          %v512 = vld [vmem:[%s509 + $0x10] sm:$0x1]
          %v513 = vld [vmem:[%s509 + $0x18] sm:$0x1]
          %v514 = vld [vmem:[%s509 + $0x20] sm:$0x1]
          %v515 = vld [vmem:[%s509 + $0x28] sm:$0x1]
          %v516 = vld [vmem:[%s509 + $0x30] sm:$0x1]
          %v517 = vld [vmem:[%s509 + $0x38] sm:$0x1]
          %v519 = vrot.slane %v508, 1
          %v520 = vrot.slane %v508, 2
          %v521 = vrot.slane %v508, 3
          %v522 = vrot.slane %v508, 4
          %v523 = vrot.slane %v508, 5
          %v524 = vrot.slane %v508, 6
          %v525 = vrot.slane %v508, 7
          %v533 = vmax.f32 %v510, %v508
          %v534 = vmax.f32 %v511, %v519
          %v535 = vmax.f32 %v512, %v520
          %v536 = vmax.f32 %v513, %v521
          %v537 = vmax.f32 %v514, %v522
          %v538 = vmax.f32 %v515, %v523
          %v539 = vmax.f32 %v516, %v524
          %v540 = vmax.f32 %v517, %v525
          %vm541 = vcmask 253952
          %542 = vst.msk [vmem:[%s509] sm:$0x1] %vm541, %v533
          %543 = vst.msk [vmem:[%s509 + $0x8] sm:$0x1] %vm541, %v534
          %544 = vst.msk [vmem:[%s509 + $0x10] sm:$0x1] %vm541, %v535
          %545 = vst.msk [vmem:[%s509 + $0x18] sm:$0x1] %vm541, %v536
          %546 = vst.msk [vmem:[%s509 + $0x20] sm:$0x1] %vm541, %v537
          %547 = vst.msk [vmem:[%s509 + $0x28] sm:$0x1] %vm541, %v538
          %548 = vst.msk [vmem:[%s509 + $0x30] sm:$0x1] %vm541, %v539
          %549 = vst.msk [vmem:[%s509 + $0x38] sm:$0x1] %vm541, %v540
        $region88: #{tpu_custom_call.1} parent=51 // loop_footer
          %s497 = sadd.s32 1, %s493
        $region89: #{tpu_custom_call.1} parent=51 // loop_footer_branch
          %492 = sbr.rel target = $region85
        $region90: #{tpu_custom_call.1} parent=51 // loop_exit
          _
        %v550 = vld [vmem:[#allocation9] sm:$0xff]
        %v551 = vld [vmem:[#allocation9 + $0x8] sm:$0xff]
        %v552 = vld [vmem:[#allocation9 + $0x10] sm:$0xff]
        %v553 = vld [vmem:[#allocation9 + $0x18] sm:$0xff]
        %vm554 = vcmask 261120
        %v556 = vsel %vm554, %v446, 0
        %558 = vmatpush.msra.mxu0 0.0
        %559 = vmatpush.msra.mxu0 0.0
        %560 = vmatpush.msra.mxu0 0.0
        %561 = vmatpush.msra.mxu0 0.0
        %562 = vmatpush.msra.mxu0 0.0
        %563 = vmatpush.msra.mxu0 0.0
        %564 = vmatpush.msra.mxu0 0.0
        %565 = vmatpush.msra.mxu0 0.0
        %566 = vmatpush.msra.mxu0 0.0
        %567 = vmatpush.msra.mxu0 0.0
        %568 = vmatpush.msra.mxu0 0.0
        %569 = vmatpush.msra.mxu0 0.0
        %570 = vmatpush.msra.mxu0 %v553
        %571 = vmatpush.msra.mxu0 %v552
        %572 = vmatpush.msra.mxu0 %v551
        %573 = vmatpush.msra.mxu0 %v550
        %574 = vmatmul.f32.gmra.mxu0 %v556
        %v575 = vpop.f32.mrf.mxu0
        %v576 = vadd.f32 0.0, %v575
        %577 = vdwg.mxu0
        %v578 = vld [vmem:[#allocation11] sm:$0xff]
        %v579 = vld [vmem:[#allocation11 + $0x8] sm:$0xff]
        %v580 = vld [vmem:[#allocation11 + $0x10] sm:$0xff]
        %v581 = vld [vmem:[#allocation11 + $0x18] sm:$0xff]
        %v583 = vsel %vm554, %v444, 0
        %585 = vmatpush.msra.mxu0 0.0
        %586 = vmatpush.msra.mxu0 0.0
        %587 = vmatpush.msra.mxu0 0.0
        %588 = vmatpush.msra.mxu0 0.0
        %589 = vmatpush.msra.mxu0 0.0
        %590 = vmatpush.msra.mxu0 0.0
        %591 = vmatpush.msra.mxu0 0.0
        %592 = vmatpush.msra.mxu0 0.0
        %593 = vmatpush.msra.mxu0 0.0
        %594 = vmatpush.msra.mxu0 0.0
        %595 = vmatpush.msra.mxu0 0.0
        %596 = vmatpush.msra.mxu0 0.0
        %597 = vmatpush.msra.mxu0 %v581
        %598 = vmatpush.msra.mxu0 %v580
        %599 = vmatpush.msra.mxu0 %v579
        %600 = vmatpush.msra.mxu0 %v578
        %601 = vmatmul.f32.gmra.mxu0 %v583
        %v602 = vpop.f32.mrf.mxu0
        %v603 = vadd.f32 0.0, %v602
        %604 = vdwg.mxu0
        %v605 = vld [vmem:[#allocation2] sm:$0xff]
        %v606 = vld [vmem:[#allocation2 + $0x8] sm:$0xff]
        %v607 = vld [vmem:[#allocation2 + $0x10] sm:$0xff]
        %v608 = vld [vmem:[#allocation2 + $0x18] sm:$0xff]
        %v609 = vld [vmem:[#allocation2 + $0x20] sm:$0xff]
        %v610 = vld [vmem:[#allocation2 + $0x28] sm:$0xff]
        %v611 = vld [vmem:[#allocation2 + $0x30] sm:$0xff]
        %v612 = vld [vmem:[#allocation2 + $0x38] sm:$0xff]
        %v613 = vld [vmem:[#allocation12] sm:$0xff]
        %v614 = vld [vmem:[#allocation12 + $0x8] sm:$0xff]
        %v615 = vld [vmem:[#allocation12 + $0x10] sm:$0xff]
        %v616 = vld [vmem:[#allocation12 + $0x18] sm:$0xff]
        %v618 = vsel %vm554, %v605, 0
        %v621 = vsel %vm554, %v606, 0
        %v624 = vsel %vm554, %v607, 0
        %v627 = vsel %vm554, %v608, 0
        %v630 = vsel %vm554, %v609, 0
        %v633 = vsel %vm554, %v610, 0
        %v636 = vsel %vm554, %v611, 0
        %v639 = vsel %vm554, %v612, 0
        %641 = vmatpush.msra.mxu0 0.0
        %642 = vmatpush.msra.mxu0 0.0
        %643 = vmatpush.msra.mxu0 0.0
        %644 = vmatpush.msra.mxu0 0.0
        %645 = vmatpush.msra.mxu0 0.0
        %646 = vmatpush.msra.mxu0 0.0
        %647 = vmatpush.msra.mxu0 0.0
        %648 = vmatpush.msra.mxu0 0.0
        %649 = vmatpush.msra.mxu0 0.0
        %650 = vmatpush.msra.mxu0 0.0
        %651 = vmatpush.msra.mxu0 0.0
        %652 = vmatpush.msra.mxu0 0.0
        %653 = vmatpush.msra.mxu0 %v616
        %654 = vmatpush.msra.mxu0 %v615
        %655 = vmatpush.msra.mxu0 %v614
        %656 = vmatpush.msra.mxu0 %v613
        %657 = vmatmul.f32.gmra.mxu0 %v618
        %v658 = vpop.f32.mrf.mxu0
        %v659 = vadd.f32 0.0, %v658
        %660 = vmatmul.f32.gmra.mxu0 %v621
        %v661 = vpop.f32.mrf.mxu0
        %v662 = vadd.f32 0.0, %v661
        %663 = vmatmul.f32.gmra.mxu0 %v624
        %v664 = vpop.f32.mrf.mxu0
        %v665 = vadd.f32 0.0, %v664
        %666 = vmatmul.f32.gmra.mxu0 %v627
        %v667 = vpop.f32.mrf.mxu0
        %v668 = vadd.f32 0.0, %v667
        %669 = vmatmul.f32.gmra.mxu0 %v630
        %v670 = vpop.f32.mrf.mxu0
        %v671 = vadd.f32 0.0, %v670
        %672 = vmatmul.f32.gmra.mxu0 %v633
        %v673 = vpop.f32.mrf.mxu0
        %v674 = vadd.f32 0.0, %v673
        %675 = vmatmul.f32.gmra.mxu0 %v636
        %v676 = vpop.f32.mrf.mxu0
        %v677 = vadd.f32 0.0, %v676
        %678 = vmatmul.f32.gmra.mxu0 %v639
        %v679 = vpop.f32.mrf.mxu0
        %v680 = vadd.f32 0.0, %v679
        %681 = vdwg.mxu0
        %v683 = vrot.slane %v576, 1
        %v684 = vrot.slane %v576, 2
        %v685 = vrot.slane %v576, 3
        %v686 = vrot.slane %v576, 4
        %v687 = vrot.slane %v576, 5
        %v688 = vrot.slane %v576, 6
        %v689 = vrot.slane %v576, 7
        %v690 = vperm.slane %v576, 0
        %v691 = vperm.slane %v683, 0
        %v692 = vperm.slane %v684, 0
        %v693 = vperm.slane %v685, 0
        %v694 = vperm.slane %v686, 0
        %v695 = vperm.slane %v687, 0
        %v696 = vperm.slane %v688, 0
        %v697 = vperm.slane %v689, 0
        %v706 = vadd.f32 %v690, %v603
        %v707 = vadd.f32 %v691, %v603
        %v708 = vadd.f32 %v692, %v603
        %v709 = vadd.f32 %v693, %v603
        %v710 = vadd.f32 %v694, %v603
        %v711 = vadd.f32 %v695, %v603
        %v712 = vadd.f32 %v696, %v603
        %v713 = vadd.f32 %v697, %v603
        %v714 = vadd.f32 %v706, %v659
        %v715 = vadd.f32 %v707, %v662
        %v716 = vadd.f32 %v708, %v665
        %v717 = vadd.f32 %v709, %v668
        %v718 = vadd.f32 %v710, %v671
        %v719 = vadd.f32 %v711, %v674
        %v720 = vadd.f32 %v712, %v677
        %v721 = vadd.f32 %v713, %v680
        %v722 = vld [vmem:[%s7] sm:$0x1]
        %v724 = vperm.slane %v722, 0
        %v726 = vadd.f32 %v714, %v724
        %v727 = vadd.f32 %v715, %v724
        %v728 = vadd.f32 %v716, %v724
        %v729 = vadd.f32 %v717, %v724
        %v730 = vadd.f32 %v718, %v724
        %v731 = vadd.f32 %v719, %v724
        %v732 = vadd.f32 %v720, %v724
        %v733 = vadd.f32 %v721, %v724
        %v734 = vld [vmem:[#allocation8] sm:$0xff]
        %v735 = vld [vmem:[#allocation8 + $0x8] sm:$0xff]
        %v736 = vld [vmem:[#allocation8 + $0x10] sm:$0xff]
        %v737 = vld [vmem:[#allocation8 + $0x18] sm:$0xff]
        %738 = vmatpush.msra.mxu0 0.0
        %739 = vmatpush.msra.mxu0 0.0
        %740 = vmatpush.msra.mxu0 0.0
        %741 = vmatpush.msra.mxu0 0.0
        %742 = vmatpush.msra.mxu0 0.0
        %743 = vmatpush.msra.mxu0 0.0
        %744 = vmatpush.msra.mxu0 0.0
        %745 = vmatpush.msra.mxu0 0.0
        %746 = vmatpush.msra.mxu0 0.0
        %747 = vmatpush.msra.mxu0 0.0
        %748 = vmatpush.msra.mxu0 0.0
        %749 = vmatpush.msra.mxu0 0.0
        %750 = vmatpush.msra.mxu0 %v737
        %751 = vmatpush.msra.mxu0 %v736
        %752 = vmatpush.msra.mxu0 %v735
        %753 = vmatpush.msra.mxu0 %v734
        %754 = vmatmul.f32.gmra.mxu0 %v556
        %v755 = vpop.f32.mrf.mxu0
        %v756 = vadd.f32 0.0, %v755
        %757 = vdwg.mxu0
        %v759 = vsel %vm554, %v756, 0
        %761 = vmatpush.xpose.msra.mxu0 0.0
        %762 = vmatpush.xpose.msra.mxu0 0.0
        %763 = vmatpush.xpose.msra.mxu0 0.0
        %764 = vmatpush.xpose.msra.mxu0 0.0
        %765 = vmatpush.xpose.msra.mxu0 0.0
        %766 = vmatpush.xpose.msra.mxu0 0.0
        %767 = vmatpush.xpose.msra.mxu0 0.0
        %768 = vmatpush.xpose.msra.mxu0 0.0
        %769 = vmatpush.xpose.msra.mxu0 0.0
        %770 = vmatpush.xpose.msra.mxu0 0.0
        %771 = vmatpush.xpose.msra.mxu0 0.0
        %772 = vmatpush.xpose.msra.mxu0 0.0
        %773 = vmatpush.xpose.msra.mxu0 0.0
        %774 = vmatpush.xpose.msra.mxu0 0.0
        %775 = vmatpush.xpose.msra.mxu0 0.0
        %776 = vmatpush.xpose.msra.mxu0 %v583
        %777 = vmatmul.f32.gmra.mxu0 %v759
        %v778 = vpop.f32.mrf.mxu0
        %v779 = vadd.f32 0.0, %v778
        %780 = vdwg.mxu0
        %v781 = vld [vmem:[%s6] sm:$0x1]
        %v782 = vperm.slane %v779, 0
        %v783 = vlaneseq
        %v784 = vshrl.u32 %v783, 7
        %786 = vset.pattern.permute.xlu0 %v784
        %787 = vperm.xlu0 %786, %v782
        %v788 = vpop.permute.xlu0 %787
        %v789 = vperm.slane %v779, 1
        %v790 = vlaneseq
        %v791 = vshrl.u32 %v790, 7
        %793 = vset.pattern.permute.xlu0 %v791
        %794 = vperm.xlu0 %793, %v789
        %v795 = vpop.permute.xlu0 %794
        %v796 = vperm.slane %v779, 2
        %v797 = vlaneseq
        %v798 = vshrl.u32 %v797, 7
        %800 = vset.pattern.permute.xlu0 %v798
        %801 = vperm.xlu0 %800, %v796
        %v802 = vpop.permute.xlu0 %801
        %v803 = vperm.slane %v779, 3
        %v804 = vlaneseq
        %v805 = vshrl.u32 %v804, 7
        %807 = vset.pattern.permute.xlu0 %v805
        %808 = vperm.xlu0 %807, %v803
        %v809 = vpop.permute.xlu0 %808
        %v810 = vperm.slane %v779, 4
        %v811 = vlaneseq
        %v812 = vshrl.u32 %v811, 7
        %814 = vset.pattern.permute.xlu0 %v812
        %815 = vperm.xlu0 %814, %v810
        %v816 = vpop.permute.xlu0 %815
        %v817 = vperm.slane %v779, 5
        %v818 = vlaneseq
        %v819 = vshrl.u32 %v818, 7
        %821 = vset.pattern.permute.xlu0 %v819
        %822 = vperm.xlu0 %821, %v817
        %v823 = vpop.permute.xlu0 %822
        %v824 = vperm.slane %v779, 6
        %v825 = vlaneseq
        %v826 = vshrl.u32 %v825, 7
        %828 = vset.pattern.permute.xlu0 %v826
        %829 = vperm.xlu0 %828, %v824
        %v830 = vpop.permute.xlu0 %829
        %v831 = vperm.slane %v779, 7
        %v832 = vlaneseq
        %v833 = vshrl.u32 %v832, 7
        %835 = vset.pattern.permute.xlu0 %v833
        %836 = vperm.xlu0 %835, %v831
        %v837 = vpop.permute.xlu0 %836
        %v838 = vperm.slane %v781, 0
        %v839 = vmul.f32 %v788, %v838
        %v840 = vmul.f32 %v795, %v838
        %v841 = vmul.f32 %v802, %v838
        %v842 = vmul.f32 %v809, %v838
        %v843 = vmul.f32 %v816, %v838
        %v844 = vmul.f32 %v823, %v838
        %v845 = vmul.f32 %v830, %v838
        %v846 = vmul.f32 %v837, %v838
        %v847 = vadd.f32 %v726, %v839
        %v848 = vadd.f32 %v727, %v840
        %v849 = vadd.f32 %v728, %v841
        %v850 = vadd.f32 %v729, %v842
        %v851 = vadd.f32 %v730, %v843
        %v852 = vadd.f32 %v731, %v844
        %v853 = vadd.f32 %v732, %v845
        %v854 = vadd.f32 %v733, %v846
        %855 = vrot.lane.b32.xlu0 %v756, 96
        %v856 = vpop.permute.xlu0 %855
        %v857 = vsel %vm554, %v856, 0
        %859 = vmatpush.xpose.msra.mxu0 0.0
        %860 = vmatpush.xpose.msra.mxu0 0.0
        %861 = vmatpush.xpose.msra.mxu0 0.0
        %862 = vmatpush.xpose.msra.mxu0 0.0
        %863 = vmatpush.xpose.msra.mxu0 0.0
        %864 = vmatpush.xpose.msra.mxu0 0.0
        %865 = vmatpush.xpose.msra.mxu0 0.0
        %866 = vmatpush.xpose.msra.mxu0 0.0
        %867 = vmatpush.xpose.msra.mxu0 0.0
        %868 = vmatpush.xpose.msra.mxu0 0.0
        %869 = vmatpush.xpose.msra.mxu0 0.0
        %870 = vmatpush.xpose.msra.mxu0 0.0
        %871 = vmatpush.xpose.msra.mxu0 0.0
        %872 = vmatpush.xpose.msra.mxu0 0.0
        %873 = vmatpush.xpose.msra.mxu0 0.0
        %874 = vmatpush.xpose.msra.mxu0 %v583
        %875 = vmatmul.f32.gmra.mxu0 %v857
        %v876 = vpop.f32.mrf.mxu0
        %v877 = vadd.f32 0.0, %v876
        %878 = vdwg.mxu0
        %v879 = vld [vmem:[%s6 + $0x1] sm:$0x1]
        %v880 = vperm.slane %v877, 0
        %v881 = vlaneseq
        %v882 = vshrl.u32 %v881, 7
        %884 = vset.pattern.permute.xlu0 %v882
        %885 = vperm.xlu0 %884, %v880
        %v886 = vpop.permute.xlu0 %885
        %v887 = vperm.slane %v877, 1
        %v888 = vlaneseq
        %v889 = vshrl.u32 %v888, 7
        %891 = vset.pattern.permute.xlu0 %v889
        %892 = vperm.xlu0 %891, %v887
        %v893 = vpop.permute.xlu0 %892
        %v894 = vperm.slane %v877, 2
        %v895 = vlaneseq
        %v896 = vshrl.u32 %v895, 7
        %898 = vset.pattern.permute.xlu0 %v896
        %899 = vperm.xlu0 %898, %v894
        %v900 = vpop.permute.xlu0 %899
        %v901 = vperm.slane %v877, 3
        %v902 = vlaneseq
        %v903 = vshrl.u32 %v902, 7
        %905 = vset.pattern.permute.xlu0 %v903
        %906 = vperm.xlu0 %905, %v901
        %v907 = vpop.permute.xlu0 %906
        %v908 = vperm.slane %v877, 4
        %v909 = vlaneseq
        %v910 = vshrl.u32 %v909, 7
        %912 = vset.pattern.permute.xlu0 %v910
        %913 = vperm.xlu0 %912, %v908
        %v914 = vpop.permute.xlu0 %913
        %v915 = vperm.slane %v877, 5
        %v916 = vlaneseq
        %v917 = vshrl.u32 %v916, 7
        %919 = vset.pattern.permute.xlu0 %v917
        %920 = vperm.xlu0 %919, %v915
        %v921 = vpop.permute.xlu0 %920
        %v922 = vperm.slane %v877, 6
        %v923 = vlaneseq
        %v924 = vshrl.u32 %v923, 7
        %926 = vset.pattern.permute.xlu0 %v924
        %927 = vperm.xlu0 %926, %v922
        %v928 = vpop.permute.xlu0 %927
        %v929 = vperm.slane %v877, 7
        %v930 = vlaneseq
        %v931 = vshrl.u32 %v930, 7
        %933 = vset.pattern.permute.xlu0 %v931
        %934 = vperm.xlu0 %933, %v929
        %v935 = vpop.permute.xlu0 %934
        %v936 = vperm.slane %v879, 0
        %v937 = vmul.f32 %v886, %v936
        %v938 = vmul.f32 %v893, %v936
        %v939 = vmul.f32 %v900, %v936
        %v940 = vmul.f32 %v907, %v936
        %v941 = vmul.f32 %v914, %v936
        %v942 = vmul.f32 %v921, %v936
        %v943 = vmul.f32 %v928, %v936
        %v944 = vmul.f32 %v935, %v936
        %v945 = vadd.f32 %v847, %v937
        %v946 = vadd.f32 %v848, %v938
        %v947 = vadd.f32 %v849, %v939
        %v948 = vadd.f32 %v850, %v940
        %v949 = vadd.f32 %v851, %v941
        %v950 = vadd.f32 %v852, %v942
        %v951 = vadd.f32 %v853, %v943
        %v952 = vadd.f32 %v854, %v944
        %953 = vrot.lane.b32.xlu0 %v756, 64
        %v954 = vpop.permute.xlu0 %953
        %v955 = vsel %vm554, %v954, 0
        %957 = vmatpush.xpose.msra.mxu0 0.0
        %958 = vmatpush.xpose.msra.mxu0 0.0
        %959 = vmatpush.xpose.msra.mxu0 0.0
        %960 = vmatpush.xpose.msra.mxu0 0.0
        %961 = vmatpush.xpose.msra.mxu0 0.0
        %962 = vmatpush.xpose.msra.mxu0 0.0
        %963 = vmatpush.xpose.msra.mxu0 0.0
        %964 = vmatpush.xpose.msra.mxu0 0.0
        %965 = vmatpush.xpose.msra.mxu0 0.0
        %966 = vmatpush.xpose.msra.mxu0 0.0
        %967 = vmatpush.xpose.msra.mxu0 0.0
        %968 = vmatpush.xpose.msra.mxu0 0.0
        %969 = vmatpush.xpose.msra.mxu0 0.0
        %970 = vmatpush.xpose.msra.mxu0 0.0
        %971 = vmatpush.xpose.msra.mxu0 0.0
        %972 = vmatpush.xpose.msra.mxu0 %v583
        %973 = vmatmul.f32.gmra.mxu0 %v955
        %v974 = vpop.f32.mrf.mxu0
        %v975 = vadd.f32 0.0, %v974
        %976 = vdwg.mxu0
        %v977 = vld [vmem:[%s6 + $0x2] sm:$0x1]
        %v978 = vperm.slane %v975, 0
        %v979 = vlaneseq
        %v980 = vshrl.u32 %v979, 7
        %982 = vset.pattern.permute.xlu0 %v980
        %983 = vperm.xlu0 %982, %v978
        %v984 = vpop.permute.xlu0 %983
        %v985 = vperm.slane %v975, 1
        %v986 = vlaneseq
        %v987 = vshrl.u32 %v986, 7
        %989 = vset.pattern.permute.xlu0 %v987
        %990 = vperm.xlu0 %989, %v985
        %v991 = vpop.permute.xlu0 %990
        %v992 = vperm.slane %v975, 2
        %v993 = vlaneseq
        %v994 = vshrl.u32 %v993, 7
        %996 = vset.pattern.permute.xlu0 %v994
        %997 = vperm.xlu0 %996, %v992
        %v998 = vpop.permute.xlu0 %997
        %v999 = vperm.slane %v975, 3
        %v1000 = vlaneseq
        %v1001 = vshrl.u32 %v1000, 7
        %1003 = vset.pattern.permute.xlu0 %v1001
        %1004 = vperm.xlu0 %1003, %v999
        %v1005 = vpop.permute.xlu0 %1004
        %v1006 = vperm.slane %v975, 4
        %v1007 = vlaneseq
        %v1008 = vshrl.u32 %v1007, 7
        %1010 = vset.pattern.permute.xlu0 %v1008
        %1011 = vperm.xlu0 %1010, %v1006
        %v1012 = vpop.permute.xlu0 %1011
        %v1013 = vperm.slane %v975, 5
        %v1014 = vlaneseq
        %v1015 = vshrl.u32 %v1014, 7
        %1017 = vset.pattern.permute.xlu0 %v1015
        %1018 = vperm.xlu0 %1017, %v1013
        %v1019 = vpop.permute.xlu0 %1018
        %v1020 = vperm.slane %v975, 6
        %v1021 = vlaneseq
        %v1022 = vshrl.u32 %v1021, 7
        %1024 = vset.pattern.permute.xlu0 %v1022
        %1025 = vperm.xlu0 %1024, %v1020
        %v1026 = vpop.permute.xlu0 %1025
        %v1027 = vperm.slane %v975, 7
        %v1028 = vlaneseq
        %v1029 = vshrl.u32 %v1028, 7
        %1031 = vset.pattern.permute.xlu0 %v1029
        %1032 = vperm.xlu0 %1031, %v1027
        %v1033 = vpop.permute.xlu0 %1032
        %v1034 = vperm.slane %v977, 0
        %v1035 = vmul.f32 %v984, %v1034
        %v1036 = vmul.f32 %v991, %v1034
        %v1037 = vmul.f32 %v998, %v1034
        %v1038 = vmul.f32 %v1005, %v1034
        %v1039 = vmul.f32 %v1012, %v1034
        %v1040 = vmul.f32 %v1019, %v1034
        %v1041 = vmul.f32 %v1026, %v1034
        %v1042 = vmul.f32 %v1033, %v1034
        %v1043 = vadd.f32 %v945, %v1035
        %v1044 = vadd.f32 %v946, %v1036
        %v1045 = vadd.f32 %v947, %v1037
        %v1046 = vadd.f32 %v948, %v1038
        %v1047 = vadd.f32 %v949, %v1039
        %v1048 = vadd.f32 %v950, %v1040
        %v1049 = vadd.f32 %v951, %v1041
        %v1050 = vadd.f32 %v952, %v1042
        %1051 = vrot.lane.b32.xlu0 %v756, 32
        %v1052 = vpop.permute.xlu0 %1051
        %v1053 = vsel %vm554, %v1052, 0
        %1055 = vmatpush.xpose.msra.mxu0 0.0
        %1056 = vmatpush.xpose.msra.mxu0 0.0
        %1057 = vmatpush.xpose.msra.mxu0 0.0
        %1058 = vmatpush.xpose.msra.mxu0 0.0
        %1059 = vmatpush.xpose.msra.mxu0 0.0
        %1060 = vmatpush.xpose.msra.mxu0 0.0
        %1061 = vmatpush.xpose.msra.mxu0 0.0
        %1062 = vmatpush.xpose.msra.mxu0 0.0
        %1063 = vmatpush.xpose.msra.mxu0 0.0
        %1064 = vmatpush.xpose.msra.mxu0 0.0
        %1065 = vmatpush.xpose.msra.mxu0 0.0
        %1066 = vmatpush.xpose.msra.mxu0 0.0
        %1067 = vmatpush.xpose.msra.mxu0 0.0
        %1068 = vmatpush.xpose.msra.mxu0 0.0
        %1069 = vmatpush.xpose.msra.mxu0 0.0
        %1070 = vmatpush.xpose.msra.mxu0 %v583
        %1071 = vmatmul.f32.gmra.mxu0 %v1053
        %v1072 = vpop.f32.mrf.mxu0
        %v1073 = vadd.f32 0.0, %v1072
        %1074 = vdwg.mxu0
        %v1075 = vld [vmem:[%s6 + $0x3] sm:$0x1]
        %v1076 = vperm.slane %v1073, 0
        %v1077 = vlaneseq
        %v1078 = vshrl.u32 %v1077, 7
        %1080 = vset.pattern.permute.xlu0 %v1078
        %1081 = vperm.xlu0 %1080, %v1076
        %v1082 = vpop.permute.xlu0 %1081
        %v1083 = vperm.slane %v1073, 1
        %v1084 = vlaneseq
        %v1085 = vshrl.u32 %v1084, 7
        %1087 = vset.pattern.permute.xlu0 %v1085
        %1088 = vperm.xlu0 %1087, %v1083
        %v1089 = vpop.permute.xlu0 %1088
        %v1090 = vperm.slane %v1073, 2
        %v1091 = vlaneseq
        %v1092 = vshrl.u32 %v1091, 7
        %1094 = vset.pattern.permute.xlu0 %v1092
        %1095 = vperm.xlu0 %1094, %v1090
        %v1096 = vpop.permute.xlu0 %1095
        %v1097 = vperm.slane %v1073, 3
        %v1098 = vlaneseq
        %v1099 = vshrl.u32 %v1098, 7
        %1101 = vset.pattern.permute.xlu0 %v1099
        %1102 = vperm.xlu0 %1101, %v1097
        %v1103 = vpop.permute.xlu0 %1102
        %v1104 = vperm.slane %v1073, 4
        %v1105 = vlaneseq
        %v1106 = vshrl.u32 %v1105, 7
        %1108 = vset.pattern.permute.xlu0 %v1106
        %1109 = vperm.xlu0 %1108, %v1104
        %v1110 = vpop.permute.xlu0 %1109
        %v1111 = vperm.slane %v1073, 5
        %v1112 = vlaneseq
        %v1113 = vshrl.u32 %v1112, 7
        %1115 = vset.pattern.permute.xlu0 %v1113
        %1116 = vperm.xlu0 %1115, %v1111
        %v1117 = vpop.permute.xlu0 %1116
        %v1118 = vperm.slane %v1073, 6
        %v1119 = vlaneseq
        %v1120 = vshrl.u32 %v1119, 7
        %1122 = vset.pattern.permute.xlu0 %v1120
        %1123 = vperm.xlu0 %1122, %v1118
        %v1124 = vpop.permute.xlu0 %1123
        %v1125 = vperm.slane %v1073, 7
        %v1126 = vlaneseq
        %v1127 = vshrl.u32 %v1126, 7
        %1129 = vset.pattern.permute.xlu0 %v1127
        %1130 = vperm.xlu0 %1129, %v1125
        %v1131 = vpop.permute.xlu0 %1130
        %v1132 = vperm.slane %v1075, 0
        %v1133 = vmul.f32 %v1082, %v1132
        %v1134 = vmul.f32 %v1089, %v1132
        %v1135 = vmul.f32 %v1096, %v1132
        %v1136 = vmul.f32 %v1103, %v1132
        %v1137 = vmul.f32 %v1110, %v1132
        %v1138 = vmul.f32 %v1117, %v1132
        %v1139 = vmul.f32 %v1124, %v1132
        %v1140 = vmul.f32 %v1131, %v1132
        %v1141 = vadd.f32 %v1043, %v1133
        %v1142 = vadd.f32 %v1044, %v1134
        %v1143 = vadd.f32 %v1045, %v1135
        %v1144 = vadd.f32 %v1046, %v1136
        %v1145 = vadd.f32 %v1047, %v1137
        %v1146 = vadd.f32 %v1048, %v1138
        %v1147 = vadd.f32 %v1049, %v1139
        %v1148 = vadd.f32 %v1050, %v1140
        %v1149 = vmul.f32 %v1141, %v1141
        %v1150 = vmul.f32 %v1142, %v1142
        %v1151 = vmul.f32 %v1143, %v1143
        %v1152 = vmul.f32 %v1144, %v1144
        %v1153 = vmul.f32 %v1145, %v1145
        %v1154 = vmul.f32 %v1146, %v1146
        %v1155 = vmul.f32 %v1147, %v1147
        %v1156 = vmul.f32 %v1148, %v1148
        %v1157 = vmul.f32 %v1141, %v1149
        %v1158 = vmul.f32 %v1142, %v1150
        %v1159 = vmul.f32 %v1143, %v1151
        %v1160 = vmul.f32 %v1144, %v1152
        %v1161 = vmul.f32 %v1145, %v1153
        %v1162 = vmul.f32 %v1146, %v1154
        %v1163 = vmul.f32 %v1147, %v1155
        %v1164 = vmul.f32 %v1148, %v1156
        %v1165 = vmul.f32 %v1157, 0.044715
        %v1166 = vmul.f32 %v1158, 0.044715
        %v1167 = vmul.f32 %v1159, 0.044715
        %v1168 = vmul.f32 %v1160, 0.044715
        %v1169 = vmul.f32 %v1161, 0.044715
        %v1170 = vmul.f32 %v1162, 0.044715
        %v1171 = vmul.f32 %v1163, 0.044715
        %v1172 = vmul.f32 %v1164, 0.044715
        %v1173 = vadd.f32 %v1141, %v1165
        %v1174 = vadd.f32 %v1142, %v1166
        %v1175 = vadd.f32 %v1143, %v1167
        %v1176 = vadd.f32 %v1144, %v1168
        %v1177 = vadd.f32 %v1145, %v1169
        %v1178 = vadd.f32 %v1146, %v1170
        %v1179 = vadd.f32 %v1147, %v1171
        %v1180 = vadd.f32 %v1148, %v1172
        %v1181 = vmul.f32 %v1173, 0.7978846
        %v1182 = vmul.f32 %v1174, 0.7978846
        %v1183 = vmul.f32 %v1175, 0.7978846
        %v1184 = vmul.f32 %v1176, 0.7978846
        %v1185 = vmul.f32 %v1177, 0.7978846
        %v1186 = vmul.f32 %v1178, 0.7978846
        %v1187 = vmul.f32 %v1179, 0.7978846
        %v1188 = vmul.f32 %v1180, 0.7978846
        %v1189 = vtanh.pop %v1181
        %v1190 = vtanh.pop %v1182
        %v1191 = vtanh.pop %v1183
        %v1192 = vtanh.pop %v1184
        %v1193 = vtanh.pop %v1185
        %v1194 = vtanh.pop %v1186
        %v1195 = vtanh.pop %v1187
        %v1196 = vtanh.pop %v1188
        %v1197 = vadd.f32 %v1189, 1.0
        %v1198 = vadd.f32 %v1190, 1.0
        %v1199 = vadd.f32 %v1191, 1.0
        %v1200 = vadd.f32 %v1192, 1.0
        %v1201 = vadd.f32 %v1193, 1.0
        %v1202 = vadd.f32 %v1194, 1.0
        %v1203 = vadd.f32 %v1195, 1.0
        %v1204 = vadd.f32 %v1196, 1.0
        %v1205 = vmul.f32 %v1197, 0.5
        %v1206 = vmul.f32 %v1198, 0.5
        %v1207 = vmul.f32 %v1199, 0.5
        %v1208 = vmul.f32 %v1200, 0.5
        %v1209 = vmul.f32 %v1201, 0.5
        %v1210 = vmul.f32 %v1202, 0.5
        %v1211 = vmul.f32 %v1203, 0.5
        %v1212 = vmul.f32 %v1204, 0.5
        %v1213 = vmul.f32 %v1141, %v1205
        %v1214 = vmul.f32 %v1142, %v1206
        %v1215 = vmul.f32 %v1143, %v1207
        %v1216 = vmul.f32 %v1144, %v1208
        %v1217 = vmul.f32 %v1145, %v1209
        %v1218 = vmul.f32 %v1146, %v1210
        %v1219 = vmul.f32 %v1147, %v1211
        %v1220 = vmul.f32 %v1148, %v1212
        %1221 = vst.msk [vmem:[%s441] sm:$0xff] %vm554, %v1213
        %1222 = vst.msk [vmem:[%s441 + $0x8] sm:$0xff] %vm554, %v1214
        %1223 = vst.msk [vmem:[%s441 + $0x10] sm:$0xff] %vm554, %v1215
        %1224 = vst.msk [vmem:[%s441 + $0x18] sm:$0xff] %vm554, %v1216
        %1225 = vst.msk [vmem:[%s441 + $0x20] sm:$0xff] %vm554, %v1217
        %1226 = vst.msk [vmem:[%s441 + $0x28] sm:$0xff] %vm554, %v1218
        %1227 = vst.msk [vmem:[%s441 + $0x30] sm:$0xff] %vm554, %v1219
        %1228 = vst.msk [vmem:[%s441 + $0x38] sm:$0xff] %vm554, %v1220
        %s1229 = sand.u32 %s230, 1
        %s1230 = scalar_lea.sflag [#allocation5], %s1229
        %s1231 = sand.u32 %s230, 1
        %s1232 = smul.addr %s1231, 64
        %s1233 = scalar_lea.vmem [#allocation14], %s1232
        // Predicated region
        $region91: #{tpu_custom_call.1} parent=51 // pred_check
          %p1234 = pneg %p240
        $region92: #{tpu_custom_call.1} parent=51 // pred_check_branch
          %1236 = sbr.rel (%p1234) target = $region94
        $region93: #{tpu_custom_call.1} parent=51 // pred_region
          %s1237 = smul.u32 8, %s35
          %1239 = vsyncadd %s1230, 0
          %s1240 = smul.addr %s34, 8
          %s1241 = sadd.s32 %s1237, %s1240
          %s1242 = smul.addr %s1241, 8
          %s1243 = scalar_lea.hbm %s8, %s1242
          %s1244 = sshll.u32 %s1233, 4
          %s1245 = int_to_ptr.vmem [resolvable:$true] %s1244
          %s1246 = sshll.u32 %s1243, 4
          %s1247 = int_to_ptr.hbm [resolvable:$true] %s1246
          %1252 = dma.vmem_to_hbm [thread:$0]  %s1245, 1024, %s1247, %s1230, 128, 128, 8
        $region94: #{tpu_custom_call.1} parent=51 // pred_fallthru
          _
      $region52: #{tpu_custom_call.1} parent=5 // pred_fallthru
        _
      %p1253 = scmp.le.s32.totalorder 2, %s25
      // Predicated region
      $region95: #{tpu_custom_call.1} parent=5 // pred_check
        %p1254 = pneg %p1253
      $region96: #{tpu_custom_call.1} parent=5 // pred_check_branch
        %1256 = sbr.rel (%p1254) target = $region98
      $region97: #{tpu_custom_call.1} parent=5 // pred_region
        %s1257 = ssub.s32 %s25, 2
        // Predicated region
        $region99: #{tpu_custom_call.1} parent=97 // pred_check
          %p1258 = pneg %p246
        $region100: #{tpu_custom_call.1} parent=97 // pred_check_branch
          %1260 = sbr.rel (%p1258) target = $region102
        $region101: #{tpu_custom_call.1} parent=97 // pred_region
          %s1261 = sand.u32 %s231, 1
          %s1262 = scalar_lea.sflag [#allocation5], %s1261
          %s1263 = sand.u32 %s231, 1
          %s1264 = smul.addr %s1263, 64
          %s1265 = scalar_lea.vmem [#allocation14], %s1264
          %1267 = dma.done %s1262, 1024
        $region102: #{tpu_custom_call.1} parent=97 // pred_fallthru
          _
      $region98: #{tpu_custom_call.1} parent=5 // pred_fallthru
        _
    $region6: #{tpu_custom_call.1} parent=1 // loop_footer
      %s29 = sadd.s32 1, %s25
    $region7: #{tpu_custom_call.1} parent=1 // loop_footer_branch
      %24 = sbr.rel target = $region3
    $region8: #{tpu_custom_call.1} parent=1 // loop_exit
      _
    %1268 = vsyncpa [#allocation4], 1
    %s1269 = scalar_lea.sflag [#allocation4], 1
    %1270 = vsyncpa %s1269, 1
    %1271 = vsyncpa [#allocation7], 1
    %s1272 = scalar_lea.sflag [#allocation7], 1
    %1273 = vsyncpa %s1272, 1
    %1274 = vsyncpa [#allocation10], 1
    %1275 = vsyncpa [#allocation13], 1
    %1276 = vsyncpa [#allocation5], 1
    %s1277 = scalar_lea.sflag [#allocation5], 1
    %1278 = vsyncpa %s1277, 1

</llo_original>
